<compile_context>
chip_gen: v7x
topology: tpu7x:2x2x1
jax: 0.10.0
libtpu: 0.0.40
codegen_flags: <defaults>
</compile_context>

<pallas_src>
import jax
import jax.numpy as jnp
from jax import lax
from jax.experimental import pallas as pl
from jax.experimental.pallas import tpu as pltpu


def _round_up(n, m):
    return (n + m - 1) // m * m


def _make_kernel(*, Tt, T_total, bb, Hp, Op, mask_tail):
    """Build the recurrence kernel for fixed (static) tile sizes."""

    def kernel(xwb_ref, h0_ref, wh_ref, wo_ref, bo_ref,
               out_ref, h_ref, hs_ref):
        # grid = (batch_blocks, time_chunks); time-chunk axis is innermost and
        # serial ("arbitrary") -- required for the carried h_ref block below.
        tc = pl.program_id(1)

        # Initialize the carried hidden state from h0 at the first time chunk
        # of this batch block. h_ref keeps the same block index for every tc,
        # so it stays resident in VMEM across the whole sequence.
        @pl.when(tc == 0)
        def _init():
            h_ref[...] = h0_ref[...]

        wh = wh_ref[...]              # [Hp, Hp], resident
        t0 = tc * Tt                  # global index of first step in chunk

        def step(i, h):
            # Serial critical path: one (bb,Hp)x(Hp,Hp) dot + add + tanh.
            h_new = jnp.tanh(
                xwb_ref[i]
                + jnp.dot(h, wh, preferred_element_type=jnp.float32))
            hs_ref[i] = h_new         # store for deferred h2o (off the chain)
            if mask_tail:
                # Freeze h on zero-padded tail timesteps so h_T stays correct.
                h_new = jnp.where(t0 + i < T_total, h_new, h)
            return h_new

        h_final = lax.fori_loop(0, Tt, step, h_ref[...], unroll=True)
        h_ref[...] = h_final          # carry to next chunk / final h_T

        # Deferred h2o: one (Tt*bb, Hp) x (Hp, Op) matmul for the whole chunk
        # instead of Tt tiny per-step matmuls + stores.
        hs = hs_ref[...].reshape(Tt * bb, Hp)
        outs = (jnp.dot(hs, wo_ref[...], preferred_element_type=jnp.float32)
                + bo_ref[...])
        out_ref[...] = outs.reshape(Tt, bb, Op)

    return kernel


def recognition_rnn_sequence(xs, h0, w_i2h, b_i2h, w_h2o, b_h2o, *,
                             time_chunk=32):
    """Run the RecognitionRNN cell over a whole sequence in one pallas_call.

    Args (PyTorch nn.Linear weight layout, i.e. [out_features, in_features]):
      xs:    [T, B, obs_dim]
      h0:    [B, nhidden]
      w_i2h: [nhidden, obs_dim + nhidden],  b_i2h: [nhidden]
      w_h2o: [latent_dim*2, nhidden],       b_h2o: [latent_dim*2]
    Returns:
      outs:  [T, B, latent_dim*2]   (h2o output at every step)
      h_T:   [B, nhidden]           (hidden state after the last step)
    """
    f32 = jnp.float32
    T, B, obs_dim = xs.shape
    nhidden = h0.shape[1]
    out_dim = w_h2o.shape[0]

    SUB, LANE = 8, 128
    bb = min(_round_up(B, SUB), 128)      # batch rows per block (sublane-dense)
    Bp = _round_up(B, bb)                 # padded batch
    n_bb = Bp // bb
    Hp = _round_up(nhidden, LANE)         # lane-dense hidden width
    Op = _round_up(out_dim, LANE)         # lane-dense output width

    Tt = min(T, time_chunk)               # timesteps per grid step
    n_tc = pl.cdiv(T, Tt)
    Tp = n_tc * Tt
    mask_tail = (Tp != T)

    # ---- One-time precompute / padding (outside the serial recurrence) ----
    # Hoist x@Wx + b_i2h off the serial chain as one batched matmul.
    wx = w_i2h[:, :obs_dim].astype(f32)                 # [nhidden, obs_dim]
    xwb = jnp.einsum('tbo,ho->tbh', xs.astype(f32), wx,
                     precision=jax.lax.Precision.HIGHEST) + b_i2h.astype(f32)

    xwb_p = jnp.zeros((Tp, Bp, Hp), f32).at[:T, :B, :nhidden].set(xwb)
    h0_p = jnp.zeros((Bp, Hp), f32).at[:B, :nhidden].set(h0.astype(f32))
    wh_p = jnp.zeros((Hp, Hp), f32).at[:nhidden, :nhidden].set(
        w_i2h[:, obs_dim:].T.astype(f32))
    wo_p = jnp.zeros((Hp, Op), f32).at[:nhidden, :out_dim].set(
        w_h2o.T.astype(f32))
    bo_p = jnp.zeros((1, Op), f32).at[0, :out_dim].set(b_h2o.astype(f32))

    kernel = _make_kernel(Tt=Tt, T_total=T, bb=bb, Hp=Hp, Op=Op,
                          mask_tail=mask_tail)

    outs_p, hT_p = pl.pallas_call(
        kernel,
        grid=(n_bb, n_tc),
        in_specs=[
            pl.BlockSpec((Tt, bb, Hp), lambda b, t: (t, b, 0)),  # xwb chunk (streamed)
            pl.BlockSpec((bb, Hp),     lambda b, t: (b, 0)),     # h0 (per batch block)
            pl.BlockSpec((Hp, Hp),     lambda b, t: (0, 0)),     # Wh  (resident)
            pl.BlockSpec((Hp, Op),     lambda b, t: (0, 0)),     # Wo  (resident)
            pl.BlockSpec((1, Op),      lambda b, t: (0, 0)),     # b_h2o (resident)
        ],
        out_specs=[
            pl.BlockSpec((Tt, bb, Op), lambda b, t: (t, b, 0)),  # outs chunk (streamed)
            pl.BlockSpec((bb, Hp),     lambda b, t: (b, 0)),     # hidden carry / h_T
        ],
        out_shape=[
            jax.ShapeDtypeStruct((Tp, Bp, Op), f32),
            jax.ShapeDtypeStruct((Bp, Hp), f32),
        ],
        scratch_shapes=[pltpu.VMEM((Tt, bb, Hp), f32)],          # per-chunk hidden states
        compiler_params=pltpu.CompilerParams(
            dimension_semantics=("parallel", "arbitrary")),
    )(xwb_p, h0_p, wh_p, wo_p, bo_p)

    return outs_p[:T, :B, :out_dim], hT_p[:B, :nhidden]


def recognition_rnn_forward(x, h, w_i2h, b_i2h, w_h2o, b_h2o):
    """Exact module semantics: forward(x, h) -> (out, h_new) for one step."""
    outs, h_new = recognition_rnn_sequence(x[None], h, w_i2h, b_i2h,
                                           w_h2o, b_h2o)
    return outs[0], h_new


if __name__ == "__main__":
    # RecognitionRNN defaults + a small batch and sequence.
    latent_dim, obs_dim, nhidden = 4, 2, 25
    batch, seq_len = 4, 16
    out_dim = latent_dim * 2

    key = jax.random.PRNGKey(0)
    kx, k1, k2, k3, k4 = jax.random.split(key, 5)

    xs = jax.random.normal(kx, (seq_len, batch, obs_dim), dtype=jnp.float32)
    h0 = jnp.zeros((batch, nhidden), dtype=jnp.float32)      # initHidden()

    # Deterministic parameters in PyTorch nn.Linear layout [out, in].
    s_i2h = 1.0 / jnp.sqrt(obs_dim + nhidden)
    s_h2o = 1.0 / jnp.sqrt(nhidden)
    w_i2h = jax.random.uniform(k1, (nhidden, obs_dim + nhidden), jnp.float32,
                               -s_i2h, s_i2h)
    b_i2h = jax.random.uniform(k2, (nhidden,), jnp.float32, -s_i2h, s_i2h)
    w_h2o = jax.random.uniform(k3, (out_dim, nhidden), jnp.float32, -s_h2o, s_h2o)
    b_h2o = jax.random.uniform(k4, (out_dim,), jnp.float32, -s_h2o, s_h2o)

    # Pure-JAX reference: the PyTorch forward applied step by step.
    def step(h, x):
        combined = jnp.concatenate([x, h], axis=1)
        h_new = jnp.tanh(combined @ w_i2h.T + b_i2h)
        out = h_new @ w_h2o.T + b_h2o
        return h_new, (out, h_new)

    h_T_ref, (outs_ref, hs_ref) = jax.lax.scan(step, h0, xs)

    # --- Fused kernel: whole recurrence in one pallas_call (single chunk) ---
    outs, h_T = recognition_rnn_sequence(xs, h0, w_i2h, b_i2h, w_h2o, b_h2o)
    jax.block_until_ready((outs, h_T))
    assert jnp.allclose(outs, outs_ref, atol=1e-4, rtol=1e-4)
    assert jnp.allclose(h_T, h_T_ref, atol=1e-4, rtol=1e-4)

    # --- Multi-chunk path (exercises the h carry across time chunks and the
    #     padded-tail masking: T=16, Tt=6 -> 3 chunks, 2 padded steps) ---
    outs_c, h_T_c = recognition_rnn_sequence(xs, h0, w_i2h, b_i2h, w_h2o, b_h2o,
                                             time_chunk=6)
    jax.block_until_ready((outs_c, h_T_c))
    assert jnp.allclose(outs_c, outs_ref, atol=1e-4, rtol=1e-4)
    assert jnp.allclose(h_T_c, h_T_ref, atol=1e-4, rtol=1e-4)

    # --- Single-step entry point (module's forward signature) ---
    out1, h1 = recognition_rnn_forward(xs[0], h0, w_i2h, b_i2h, w_h2o, b_h2o)
    jax.block_until_ready((out1, h1))
    assert jnp.allclose(out1, outs_ref[0], atol=1e-4, rtol=1e-4)
    assert jnp.allclose(h1, hs_ref[0], atol=1e-4, rtol=1e-4)

    print("KERNEL_OK")
</pallas_src>

<mosaic_0001>
module attributes {stable_mosaic.version = 11 : i64} {
  func.func @kernel(%arg0: i32, %arg1: i32, %arg2: memref<16x8x128xf32, #tpu.memory_space<vmem>>, %arg3: memref<8x128xf32, #tpu.memory_space<vmem>>, %arg4: memref<128x128xf32, #tpu.memory_space<vmem>>, %arg5: memref<128x128xf32, #tpu.memory_space<vmem>>, %arg6: memref<1x128xf32, #tpu.memory_space<vmem>>, %arg7: memref<16x8x128xf32, #tpu.memory_space<vmem>>, %arg8: memref<8x128xf32, #tpu.memory_space<vmem>>, %arg9: memref<16x8x128xf32, #tpu.memory_space<vmem>>) attributes {dimension_semantics = [#tpu.dimension_semantics<parallel>, #tpu.dimension_semantics<arbitrary>], iteration_bounds = array<i64: 1, 1>, scalar_prefetch = 0 : i64, scratch_operands = 1 : i64, tpu.core_type = #tpu.core_type<tc>, window_params = [{transform_indices = @transform_0, window_bounds = array<i64: 16, 8, 128>}, {transform_indices = @transform_1, window_bounds = array<i64: 8, 128>}, {pipeline_mode = #tpu.pipeline_mode<synchronous>, transform_indices = @transform_2, window_bounds = array<i64: 128, 128>}, {pipeline_mode = #tpu.pipeline_mode<synchronous>, transform_indices = @transform_3, window_bounds = array<i64: 128, 128>}, {pipeline_mode = #tpu.pipeline_mode<synchronous>, transform_indices = @transform_4, window_bounds = array<i64: 1, 128>}, {transform_indices = @transform_5, window_bounds = array<i64: 16, 8, 128>}, {transform_indices = @transform_6, window_bounds = array<i64: 8, 128>}]} {
    %c0_i32 = arith.constant 0 : i32
    %0 = arith.cmpi eq, %arg1, %c0_i32 : i32
    %1 = arith.extui %0 : i1 to i32
    %c0_i32_0 = arith.constant 0 : i32
    %2 = arith.cmpi ne, %1, %c0_i32_0 : i32
    scf.if %2 {
      %c0_97 = arith.constant 0 : index
      %c0_98 = arith.constant 0 : index
      %175 = vector.load %arg3[%c0_97, %c0_98] : memref<8x128xf32, #tpu.memory_space<vmem>>, vector<8x128xf32>
      %c0_99 = arith.constant 0 : index
      %c0_100 = arith.constant 0 : index
      %176 = vector.load %arg8[%c0_99, %c0_100] : memref<8x128xf32, #tpu.memory_space<vmem>>, vector<8x128xf32>
      tpu.vector_store %arg8[%c0_99, %c0_100], %175 {strides = array<i32>} : memref<8x128xf32, #tpu.memory_space<vmem>>, vector<8x128xf32>,
    } else {
    }
    %c0 = arith.constant 0 : index
    %c0_1 = arith.constant 0 : index
    %3 = vector.load %arg4[%c0, %c0_1] : memref<128x128xf32, #tpu.memory_space<vmem>>, vector<128x128xf32>
    %c0_2 = arith.constant 0 : index
    %c0_3 = arith.constant 0 : index
    %4 = vector.load %arg8[%c0_2, %c0_3] : memref<8x128xf32, #tpu.memory_space<vmem>>, vector<8x128xf32>
    %c0_i32_4 = arith.constant 0 : i32
    %5 = arith.index_cast %c0_i32_4 : i32 to index
    %c0_5 = arith.constant 0 : index
    %c0_6 = arith.constant 0 : index
    %6 = vector.load %arg2[%5, %c0_5, %c0_6] : memref<16x8x128xf32, #tpu.memory_space<vmem>>, vector<1x8x128xf32>
    %7 = vector.shape_cast %6 : vector<1x8x128xf32> to vector<8x128xf32>
    %cst = arith.constant dense<0.000000e+00> : vector<8x128xf32>
    %8 = tpu.matmul %4, %3, %cst {dimension_numbers = #tpu.dot_dimension_numbers<[1], [0], [0], [1], [0, 0, 1, 1], [], []>} : vector<8x128xf32>, vector<128x128xf32>, vector<8x128xf32> -> vector<8x128xf32>
    %9 = arith.addf %7, %8 : vector<8x128xf32>
    %10 = math.tanh %9 : vector<8x128xf32>
    %11 = arith.index_cast %c0_i32_4 : i32 to index
    %c0_7 = arith.constant 0 : index
    %c0_8 = arith.constant 0 : index
    %12 = vector.load %arg9[%11, %c0_7, %c0_8] : memref<16x8x128xf32, #tpu.memory_space<vmem>>, vector<1x8x128xf32>
    %13 = vector.shape_cast %12 : vector<1x8x128xf32> to vector<8x128xf32>
    %14 = vector.shape_cast %10 : vector<8x128xf32> to vector<1x8x128xf32>
    tpu.vector_store %arg9[%11, %c0_7, %c0_8], %14 {strides = array<i32>} : memref<16x8x128xf32, #tpu.memory_space<vmem>>, vector<1x8x128xf32>,
    %c1_i32 = arith.constant 1 : i32
    %15 = arith.index_cast %c1_i32 : i32 to index
    %c0_9 = arith.constant 0 : index
    %c0_10 = arith.constant 0 : index
    %16 = vector.load %arg2[%15, %c0_9, %c0_10] : memref<16x8x128xf32, #tpu.memory_space<vmem>>, vector<1x8x128xf32>
    %17 = vector.shape_cast %16 : vector<1x8x128xf32> to vector<8x128xf32>
    %cst_11 = arith.constant dense<0.000000e+00> : vector<8x128xf32>
    %18 = tpu.matmul %10, %3, %cst_11 {dimension_numbers = #tpu.dot_dimension_numbers<[1], [0], [0], [1], [0, 0, 1, 1], [], []>} : vector<8x128xf32>, vector<128x128xf32>, vector<8x128xf32> -> vector<8x128xf32>
    %19 = arith.addf %17, %18 : vector<8x128xf32>
    %20 = math.tanh %19 : vector<8x128xf32>
    %21 = arith.index_cast %c1_i32 : i32 to index
    %c0_12 = arith.constant 0 : index
    %c0_13 = arith.constant 0 : index
    %22 = vector.load %arg9[%21, %c0_12, %c0_13] : memref<16x8x128xf32, #tpu.memory_space<vmem>>, vector<1x8x128xf32>
    %23 = vector.shape_cast %22 : vector<1x8x128xf32> to vector<8x128xf32>
    %24 = vector.shape_cast %20 : vector<8x128xf32> to vector<1x8x128xf32>
    tpu.vector_store %arg9[%21, %c0_12, %c0_13], %24 {strides = array<i32>} : memref<16x8x128xf32, #tpu.memory_space<vmem>>, vector<1x8x128xf32>,
    %c2_i32 = arith.constant 2 : i32
    %25 = arith.index_cast %c2_i32 : i32 to index
    %c0_14 = arith.constant 0 : index
    %c0_15 = arith.constant 0 : index
    %26 = vector.load %arg2[%25, %c0_14, %c0_15] : memref<16x8x128xf32, #tpu.memory_space<vmem>>, vector<1x8x128xf32>
    %27 = vector.shape_cast %26 : vector<1x8x128xf32> to vector<8x128xf32>
    %cst_16 = arith.constant dense<0.000000e+00> : vector<8x128xf32>
    %28 = tpu.matmul %20, %3, %cst_16 {dimension_numbers = #tpu.dot_dimension_numbers<[1], [0], [0], [1], [0, 0, 1, 1], [], []>} : vector<8x128xf32>, vector<128x128xf32>, vector<8x128xf32> -> vector<8x128xf32>
    %29 = arith.addf %27, %28 : vector<8x128xf32>
    %30 = math.tanh %29 : vector<8x128xf32>
    %31 = arith.index_cast %c2_i32 : i32 to index
    %c0_17 = arith.constant 0 : index
    %c0_18 = arith.constant 0 : index
    %32 = vector.load %arg9[%31, %c0_17, %c0_18] : memref<16x8x128xf32, #tpu.memory_space<vmem>>, vector<1x8x128xf32>
    %33 = vector.shape_cast %32 : vector<1x8x128xf32> to vector<8x128xf32>
    %34 = vector.shape_cast %30 : vector<8x128xf32> to vector<1x8x128xf32>
    tpu.vector_store %arg9[%31, %c0_17, %c0_18], %34 {strides = array<i32>} : memref<16x8x128xf32, #tpu.memory_space<vmem>>, vector<1x8x128xf32>,
    %c3_i32 = arith.constant 3 : i32
    %35 = arith.index_cast %c3_i32 : i32 to index
    %c0_19 = arith.constant 0 : index
    %c0_20 = arith.constant 0 : index
    %36 = vector.load %arg2[%35, %c0_19, %c0_20] : memref<16x8x128xf32, #tpu.memory_space<vmem>>, vector<1x8x128xf32>
    %37 = vector.shape_cast %36 : vector<1x8x128xf32> to vector<8x128xf32>
    %cst_21 = arith.constant dense<0.000000e+00> : vector<8x128xf32>
    %38 = tpu.matmul %30, %3, %cst_21 {dimension_numbers = #tpu.dot_dimension_numbers<[1], [0], [0], [1], [0, 0, 1, 1], [], []>} : vector<8x128xf32>, vector<128x128xf32>, vector<8x128xf32> -> vector<8x128xf32>
    %39 = arith.addf %37, %38 : vector<8x128xf32>
    %40 = math.tanh %39 : vector<8x128xf32>
    %41 = arith.index_cast %c3_i32 : i32 to index
    %c0_22 = arith.constant 0 : index
    %c0_23 = arith.constant 0 : index
    %42 = vector.load %arg9[%41, %c0_22, %c0_23] : memref<16x8x128xf32, #tpu.memory_space<vmem>>, vector<1x8x128xf32>
    %43 = vector.shape_cast %42 : vector<1x8x128xf32> to vector<8x128xf32>
    %44 = vector.shape_cast %40 : vector<8x128xf32> to vector<1x8x128xf32>
    tpu.vector_store %arg9[%41, %c0_22, %c0_23], %44 {strides = array<i32>} : memref<16x8x128xf32, #tpu.memory_space<vmem>>, vector<1x8x128xf32>,
    %c4_i32 = arith.constant 4 : i32
    %45 = arith.index_cast %c4_i32 : i32 to index
    %c0_24 = arith.constant 0 : index
    %c0_25 = arith.constant 0 : index
    %46 = vector.load %arg2[%45, %c0_24, %c0_25] : memref<16x8x128xf32, #tpu.memory_space<vmem>>, vector<1x8x128xf32>
    %47 = vector.shape_cast %46 : vector<1x8x128xf32> to vector<8x128xf32>
    %cst_26 = arith.constant dense<0.000000e+00> : vector<8x128xf32>
    %48 = tpu.matmul %40, %3, %cst_26 {dimension_numbers = #tpu.dot_dimension_numbers<[1], [0], [0], [1], [0, 0, 1, 1], [], []>} : vector<8x128xf32>, vector<128x128xf32>, vector<8x128xf32> -> vector<8x128xf32>
    %49 = arith.addf %47, %48 : vector<8x128xf32>
    %50 = math.tanh %49 : vector<8x128xf32>
    %51 = arith.index_cast %c4_i32 : i32 to index
    %c0_27 = arith.constant 0 : index
    %c0_28 = arith.constant 0 : index
    %52 = vector.load %arg9[%51, %c0_27, %c0_28] : memref<16x8x128xf32, #tpu.memory_space<vmem>>, vector<1x8x128xf32>
    %53 = vector.shape_cast %52 : vector<1x8x128xf32> to vector<8x128xf32>
    %54 = vector.shape_cast %50 : vector<8x128xf32> to vector<1x8x128xf32>
    tpu.vector_store %arg9[%51, %c0_27, %c0_28], %54 {strides = array<i32>} : memref<16x8x128xf32, #tpu.memory_space<vmem>>, vector<1x8x128xf32>,
    %c5_i32 = arith.constant 5 : i32
    %55 = arith.index_cast %c5_i32 : i32 to index
    %c0_29 = arith.constant 0 : index
    %c0_30 = arith.constant 0 : index
    %56 = vector.load %arg2[%55, %c0_29, %c0_30] : memref<16x8x128xf32, #tpu.memory_space<vmem>>, vector<1x8x128xf32>
    %57 = vector.shape_cast %56 : vector<1x8x128xf32> to vector<8x128xf32>
    %cst_31 = arith.constant dense<0.000000e+00> : vector<8x128xf32>
    %58 = tpu.matmul %50, %3, %cst_31 {dimension_numbers = #tpu.dot_dimension_numbers<[1], [0], [0], [1], [0, 0, 1, 1], [], []>} : vector<8x128xf32>, vector<128x128xf32>, vector<8x128xf32> -> vector<8x128xf32>
    %59 = arith.addf %57, %58 : vector<8x128xf32>
    %60 = math.tanh %59 : vector<8x128xf32>
    %61 = arith.index_cast %c5_i32 : i32 to index
    %c0_32 = arith.constant 0 : index
    %c0_33 = arith.constant 0 : index
    %62 = vector.load %arg9[%61, %c0_32, %c0_33] : memref<16x8x128xf32, #tpu.memory_space<vmem>>, vector<1x8x128xf32>
    %63 = vector.shape_cast %62 : vector<1x8x128xf32> to vector<8x128xf32>
    %64 = vector.shape_cast %60 : vector<8x128xf32> to vector<1x8x128xf32>
    tpu.vector_store %arg9[%61, %c0_32, %c0_33], %64 {strides = array<i32>} : memref<16x8x128xf32, #tpu.memory_space<vmem>>, vector<1x8x128xf32>,
    %c6_i32 = arith.constant 6 : i32
    %65 = arith.index_cast %c6_i32 : i32 to index
    %c0_34 = arith.constant 0 : index
    %c0_35 = arith.constant 0 : index
    %66 = vector.load %arg2[%65, %c0_34, %c0_35] : memref<16x8x128xf32, #tpu.memory_space<vmem>>, vector<1x8x128xf32>
    %67 = vector.shape_cast %66 : vector<1x8x128xf32> to vector<8x128xf32>
    %cst_36 = arith.constant dense<0.000000e+00> : vector<8x128xf32>
    %68 = tpu.matmul %60, %3, %cst_36 {dimension_numbers = #tpu.dot_dimension_numbers<[1], [0], [0], [1], [0, 0, 1, 1], [], []>} : vector<8x128xf32>, vector<128x128xf32>, vector<8x128xf32> -> vector<8x128xf32>
    %69 = arith.addf %67, %68 : vector<8x128xf32>
    %70 = math.tanh %69 : vector<8x128xf32>
    %71 = arith.index_cast %c6_i32 : i32 to index
    %c0_37 = arith.constant 0 : index
    %c0_38 = arith.constant 0 : index
    %72 = vector.load %arg9[%71, %c0_37, %c0_38] : memref<16x8x128xf32, #tpu.memory_space<vmem>>, vector<1x8x128xf32>
    %73 = vector.shape_cast %72 : vector<1x8x128xf32> to vector<8x128xf32>
    %74 = vector.shape_cast %70 : vector<8x128xf32> to vector<1x8x128xf32>
    tpu.vector_store %arg9[%71, %c0_37, %c0_38], %74 {strides = array<i32>} : memref<16x8x128xf32, #tpu.memory_space<vmem>>, vector<1x8x128xf32>,
    %c7_i32 = arith.constant 7 : i32
    %75 = arith.index_cast %c7_i32 : i32 to index
    %c0_39 = arith.constant 0 : index
    %c0_40 = arith.constant 0 : index
    %76 = vector.load %arg2[%75, %c0_39, %c0_40] : memref<16x8x128xf32, #tpu.memory_space<vmem>>, vector<1x8x128xf32>
    %77 = vector.shape_cast %76 : vector<1x8x128xf32> to vector<8x128xf32>
    %cst_41 = arith.constant dense<0.000000e+00> : vector<8x128xf32>
    %78 = tpu.matmul %70, %3, %cst_41 {dimension_numbers = #tpu.dot_dimension_numbers<[1], [0], [0], [1], [0, 0, 1, 1], [], []>} : vector<8x128xf32>, vector<128x128xf32>, vector<8x128xf32> -> vector<8x128xf32>
    %79 = arith.addf %77, %78 : vector<8x128xf32>
    %80 = math.tanh %79 : vector<8x128xf32>
    %81 = arith.index_cast %c7_i32 : i32 to index
    %c0_42 = arith.constant 0 : index
    %c0_43 = arith.constant 0 : index
    %82 = vector.load %arg9[%81, %c0_42, %c0_43] : memref<16x8x128xf32, #tpu.memory_space<vmem>>, vector<1x8x128xf32>
    %83 = vector.shape_cast %82 : vector<1x8x128xf32> to vector<8x128xf32>
    %84 = vector.shape_cast %80 : vector<8x128xf32> to vector<1x8x128xf32>
    tpu.vector_store %arg9[%81, %c0_42, %c0_43], %84 {strides = array<i32>} : memref<16x8x128xf32, #tpu.memory_space<vmem>>, vector<1x8x128xf32>,
    %c8_i32 = arith.constant 8 : i32
    %85 = arith.index_cast %c8_i32 : i32 to index
    %c0_44 = arith.constant 0 : index
    %c0_45 = arith.constant 0 : index
    %86 = vector.load %arg2[%85, %c0_44, %c0_45] : memref<16x8x128xf32, #tpu.memory_space<vmem>>, vector<1x8x128xf32>
    %87 = vector.shape_cast %86 : vector<1x8x128xf32> to vector<8x128xf32>
    %cst_46 = arith.constant dense<0.000000e+00> : vector<8x128xf32>
    %88 = tpu.matmul %80, %3, %cst_46 {dimension_numbers = #tpu.dot_dimension_numbers<[1], [0], [0], [1], [0, 0, 1, 1], [], []>} : vector<8x128xf32>, vector<128x128xf32>, vector<8x128xf32> -> vector<8x128xf32>
    %89 = arith.addf %87, %88 : vector<8x128xf32>
    %90 = math.tanh %89 : vector<8x128xf32>
    %91 = arith.index_cast %c8_i32 : i32 to index
    %c0_47 = arith.constant 0 : index
    %c0_48 = arith.constant 0 : index
    %92 = vector.load %arg9[%91, %c0_47, %c0_48] : memref<16x8x128xf32, #tpu.memory_space<vmem>>, vector<1x8x128xf32>
    %93 = vector.shape_cast %92 : vector<1x8x128xf32> to vector<8x128xf32>
    %94 = vector.shape_cast %90 : vector<8x128xf32> to vector<1x8x128xf32>
    tpu.vector_store %arg9[%91, %c0_47, %c0_48], %94 {strides = array<i32>} : memref<16x8x128xf32, #tpu.memory_space<vmem>>, vector<1x8x128xf32>,
    %c9_i32 = arith.constant 9 : i32
    %95 = arith.index_cast %c9_i32 : i32 to index
    %c0_49 = arith.constant 0 : index
    %c0_50 = arith.constant 0 : index
    %96 = vector.load %arg2[%95, %c0_49, %c0_50] : memref<16x8x128xf32, #tpu.memory_space<vmem>>, vector<1x8x128xf32>
    %97 = vector.shape_cast %96 : vector<1x8x128xf32> to vector<8x128xf32>
    %cst_51 = arith.constant dense<0.000000e+00> : vector<8x128xf32>
    %98 = tpu.matmul %90, %3, %cst_51 {dimension_numbers = #tpu.dot_dimension_numbers<[1], [0], [0], [1], [0, 0, 1, 1], [], []>} : vector<8x128xf32>, vector<128x128xf32>, vector<8x128xf32> -> vector<8x128xf32>
    %99 = arith.addf %97, %98 : vector<8x128xf32>
    %100 = math.tanh %99 : vector<8x128xf32>
    %101 = arith.index_cast %c9_i32 : i32 to index
    %c0_52 = arith.constant 0 : index
    %c0_53 = arith.constant 0 : index
    %102 = vector.load %arg9[%101, %c0_52, %c0_53] : memref<16x8x128xf32, #tpu.memory_space<vmem>>, vector<1x8x128xf32>
    %103 = vector.shape_cast %102 : vector<1x8x128xf32> to vector<8x128xf32>
    %104 = vector.shape_cast %100 : vector<8x128xf32> to vector<1x8x128xf32>
    tpu.vector_store %arg9[%101, %c0_52, %c0_53], %104 {strides = array<i32>} : memref<16x8x128xf32, #tpu.memory_space<vmem>>, vector<1x8x128xf32>,
    %c10_i32 = arith.constant 10 : i32
    %105 = arith.index_cast %c10_i32 : i32 to index
    %c0_54 = arith.constant 0 : index
    %c0_55 = arith.constant 0 : index
    %106 = vector.load %arg2[%105, %c0_54, %c0_55] : memref<16x8x128xf32, #tpu.memory_space<vmem>>, vector<1x8x128xf32>
    %107 = vector.shape_cast %106 : vector<1x8x128xf32> to vector<8x128xf32>
    %cst_56 = arith.constant dense<0.000000e+00> : vector<8x128xf32>
    %108 = tpu.matmul %100, %3, %cst_56 {dimension_numbers = #tpu.dot_dimension_numbers<[1], [0], [0], [1], [0, 0, 1, 1], [], []>} : vector<8x128xf32>, vector<128x128xf32>, vector<8x128xf32> -> vector<8x128xf32>
    %109 = arith.addf %107, %108 : vector<8x128xf32>
    %110 = math.tanh %109 : vector<8x128xf32>
    %111 = arith.index_cast %c10_i32 : i32 to index
    %c0_57 = arith.constant 0 : index
    %c0_58 = arith.constant 0 : index
    %112 = vector.load %arg9[%111, %c0_57, %c0_58] : memref<16x8x128xf32, #tpu.memory_space<vmem>>, vector<1x8x128xf32>
    %113 = vector.shape_cast %112 : vector<1x8x128xf32> to vector<8x128xf32>
    %114 = vector.shape_cast %110 : vector<8x128xf32> to vector<1x8x128xf32>
    tpu.vector_store %arg9[%111, %c0_57, %c0_58], %114 {strides = array<i32>} : memref<16x8x128xf32, #tpu.memory_space<vmem>>, vector<1x8x128xf32>,
    %c11_i32 = arith.constant 11 : i32
    %115 = arith.index_cast %c11_i32 : i32 to index
    %c0_59 = arith.constant 0 : index
    %c0_60 = arith.constant 0 : index
    %116 = vector.load %arg2[%115, %c0_59, %c0_60] : memref<16x8x128xf32, #tpu.memory_space<vmem>>, vector<1x8x128xf32>
    %117 = vector.shape_cast %116 : vector<1x8x128xf32> to vector<8x128xf32>
    %cst_61 = arith.constant dense<0.000000e+00> : vector<8x128xf32>
    %118 = tpu.matmul %110, %3, %cst_61 {dimension_numbers = #tpu.dot_dimension_numbers<[1], [0], [0], [1], [0, 0, 1, 1], [], []>} : vector<8x128xf32>, vector<128x128xf32>, vector<8x128xf32> -> vector<8x128xf32>
    %119 = arith.addf %117, %118 : vector<8x128xf32>
    %120 = math.tanh %119 : vector<8x128xf32>
    %121 = arith.index_cast %c11_i32 : i32 to index
    %c0_62 = arith.constant 0 : index
    %c0_63 = arith.constant 0 : index
    %122 = vector.load %arg9[%121, %c0_62, %c0_63] : memref<16x8x128xf32, #tpu.memory_space<vmem>>, vector<1x8x128xf32>
    %123 = vector.shape_cast %122 : vector<1x8x128xf32> to vector<8x128xf32>
    %124 = vector.shape_cast %120 : vector<8x128xf32> to vector<1x8x128xf32>
    tpu.vector_store %arg9[%121, %c0_62, %c0_63], %124 {strides = array<i32>} : memref<16x8x128xf32, #tpu.memory_space<vmem>>, vector<1x8x128xf32>,
    %c12_i32 = arith.constant 12 : i32
    %125 = arith.index_cast %c12_i32 : i32 to index
    %c0_64 = arith.constant 0 : index
    %c0_65 = arith.constant 0 : index
    %126 = vector.load %arg2[%125, %c0_64, %c0_65] : memref<16x8x128xf32, #tpu.memory_space<vmem>>, vector<1x8x128xf32>
    %127 = vector.shape_cast %126 : vector<1x8x128xf32> to vector<8x128xf32>
    %cst_66 = arith.constant dense<0.000000e+00> : vector<8x128xf32>
    %128 = tpu.matmul %120, %3, %cst_66 {dimension_numbers = #tpu.dot_dimension_numbers<[1], [0], [0], [1], [0, 0, 1, 1], [], []>} : vector<8x128xf32>, vector<128x128xf32>, vector<8x128xf32> -> vector<8x128xf32>
    %129 = arith.addf %127, %128 : vector<8x128xf32>
    %130 = math.tanh %129 : vector<8x128xf32>
    %131 = arith.index_cast %c12_i32 : i32 to index
    %c0_67 = arith.constant 0 : index
    %c0_68 = arith.constant 0 : index
    %132 = vector.load %arg9[%131, %c0_67, %c0_68] : memref<16x8x128xf32, #tpu.memory_space<vmem>>, vector<1x8x128xf32>
    %133 = vector.shape_cast %132 : vector<1x8x128xf32> to vector<8x128xf32>
    %134 = vector.shape_cast %130 : vector<8x128xf32> to vector<1x8x128xf32>
    tpu.vector_store %arg9[%131, %c0_67, %c0_68], %134 {strides = array<i32>} : memref<16x8x128xf32, #tpu.memory_space<vmem>>, vector<1x8x128xf32>,
    %c13_i32 = arith.constant 13 : i32
    %135 = arith.index_cast %c13_i32 : i32 to index
    %c0_69 = arith.constant 0 : index
    %c0_70 = arith.constant 0 : index
    %136 = vector.load %arg2[%135, %c0_69, %c0_70] : memref<16x8x128xf32, #tpu.memory_space<vmem>>, vector<1x8x128xf32>
    %137 = vector.shape_cast %136 : vector<1x8x128xf32> to vector<8x128xf32>
    %cst_71 = arith.constant dense<0.000000e+00> : vector<8x128xf32>
    %138 = tpu.matmul %130, %3, %cst_71 {dimension_numbers = #tpu.dot_dimension_numbers<[1], [0], [0], [1], [0, 0, 1, 1], [], []>} : vector<8x128xf32>, vector<128x128xf32>, vector<8x128xf32> -> vector<8x128xf32>
    %139 = arith.addf %137, %138 : vector<8x128xf32>
    %140 = math.tanh %139 : vector<8x128xf32>
    %141 = arith.index_cast %c13_i32 : i32 to index
    %c0_72 = arith.constant 0 : index
    %c0_73 = arith.constant 0 : index
    %142 = vector.load %arg9[%141, %c0_72, %c0_73] : memref<16x8x128xf32, #tpu.memory_space<vmem>>, vector<1x8x128xf32>
    %143 = vector.shape_cast %142 : vector<1x8x128xf32> to vector<8x128xf32>
    %144 = vector.shape_cast %140 : vector<8x128xf32> to vector<1x8x128xf32>
    tpu.vector_store %arg9[%141, %c0_72, %c0_73], %144 {strides = array<i32>} : memref<16x8x128xf32, #tpu.memory_space<vmem>>, vector<1x8x128xf32>,
    %c14_i32 = arith.constant 14 : i32
    %145 = arith.index_cast %c14_i32 : i32 to index
    %c0_74 = arith.constant 0 : index
    %c0_75 = arith.constant 0 : index
    %146 = vector.load %arg2[%145, %c0_74, %c0_75] : memref<16x8x128xf32, #tpu.memory_space<vmem>>, vector<1x8x128xf32>
    %147 = vector.shape_cast %146 : vector<1x8x128xf32> to vector<8x128xf32>
    %cst_76 = arith.constant dense<0.000000e+00> : vector<8x128xf32>
    %148 = tpu.matmul %140, %3, %cst_76 {dimension_numbers = #tpu.dot_dimension_numbers<[1], [0], [0], [1], [0, 0, 1, 1], [], []>} : vector<8x128xf32>, vector<128x128xf32>, vector<8x128xf32> -> vector<8x128xf32>
    %149 = arith.addf %147, %148 : vector<8x128xf32>
    %150 = math.tanh %149 : vector<8x128xf32>
    %151 = arith.index_cast %c14_i32 : i32 to index
    %c0_77 = arith.constant 0 : index
    %c0_78 = arith.constant 0 : index
    %152 = vector.load %arg9[%151, %c0_77, %c0_78] : memref<16x8x128xf32, #tpu.memory_space<vmem>>, vector<1x8x128xf32>
    %153 = vector.shape_cast %152 : vector<1x8x128xf32> to vector<8x128xf32>
    %154 = vector.shape_cast %150 : vector<8x128xf32> to vector<1x8x128xf32>
    tpu.vector_store %arg9[%151, %c0_77, %c0_78], %154 {strides = array<i32>} : memref<16x8x128xf32, #tpu.memory_space<vmem>>, vector<1x8x128xf32>,
    %c15_i32 = arith.constant 15 : i32
    %155 = arith.index_cast %c15_i32 : i32 to index
    %c0_79 = arith.constant 0 : index
    %c0_80 = arith.constant 0 : index
    %156 = vector.load %arg2[%155, %c0_79, %c0_80] : memref<16x8x128xf32, #tpu.memory_space<vmem>>, vector<1x8x128xf32>
    %157 = vector.shape_cast %156 : vector<1x8x128xf32> to vector<8x128xf32>
    %cst_81 = arith.constant dense<0.000000e+00> : vector<8x128xf32>
    %158 = tpu.matmul %150, %3, %cst_81 {dimension_numbers = #tpu.dot_dimension_numbers<[1], [0], [0], [1], [0, 0, 1, 1], [], []>} : vector<8x128xf32>, vector<128x128xf32>, vector<8x128xf32> -> vector<8x128xf32>
    %159 = arith.addf %157, %158 : vector<8x128xf32>
    %160 = math.tanh %159 : vector<8x128xf32>
    %161 = arith.index_cast %c15_i32 : i32 to index
    %c0_82 = arith.constant 0 : index
    %c0_83 = arith.constant 0 : index
    %162 = vector.load %arg9[%161, %c0_82, %c0_83] : memref<16x8x128xf32, #tpu.memory_space<vmem>>, vector<1x8x128xf32>
    %163 = vector.shape_cast %162 : vector<1x8x128xf32> to vector<8x128xf32>
    %164 = vector.shape_cast %160 : vector<8x128xf32> to vector<1x8x128xf32>
    tpu.vector_store %arg9[%161, %c0_82, %c0_83], %164 {strides = array<i32>} : memref<16x8x128xf32, #tpu.memory_space<vmem>>, vector<1x8x128xf32>,
    %c16_i32 = arith.constant 16 : i32
    %c0_84 = arith.constant 0 : index
    %c0_85 = arith.constant 0 : index
    %165 = vector.load %arg8[%c0_84, %c0_85] : memref<8x128xf32, #tpu.memory_space<vmem>>, vector<8x128xf32>
    tpu.vector_store %arg8[%c0_84, %c0_85], %160 {strides = array<i32>} : memref<8x128xf32, #tpu.memory_space<vmem>>, vector<8x128xf32>,
    %c0_86 = arith.constant 0 : index
    %c0_87 = arith.constant 0 : index
    %c0_88 = arith.constant 0 : index
    %166 = vector.load %arg9[%c0_86, %c0_87, %c0_88] : memref<16x8x128xf32, #tpu.memory_space<vmem>>, vector<16x8x128xf32>
    %167 = vector.shape_cast %166 : vector<16x8x128xf32> to vector<128x128xf32>
    %c0_89 = arith.constant 0 : index
    %c0_90 = arith.constant 0 : index
    %168 = vector.load %arg5[%c0_89, %c0_90] : memref<128x128xf32, #tpu.memory_space<vmem>>, vector<128x128xf32>
    %cst_91 = arith.constant dense<0.000000e+00> : vector<128x128xf32>
    %169 = tpu.matmul %167, %168, %cst_91 {dimension_numbers = #tpu.dot_dimension_numbers<[1], [0], [0], [1], [0, 0, 1, 1], [], []>} : vector<128x128xf32>, vector<128x128xf32>, vector<128x128xf32> -> vector<128x128xf32>
    %c0_92 = arith.constant 0 : index
    %c0_93 = arith.constant 0 : index
    %170 = vector.load %arg6[%c0_92, %c0_93] : memref<1x128xf32, #tpu.memory_space<vmem>>, vector<1x128xf32>
    %171 = vector.broadcast %170 : vector<1x128xf32> to vector<128x128xf32>
    %172 = arith.addf %169, %171 : vector<128x128xf32>
    %173 = vector.shape_cast %172 : vector<128x128xf32> to vector<16x8x128xf32>
    %c0_94 = arith.constant 0 : index
    %c0_95 = arith.constant 0 : index
    %c0_96 = arith.constant 0 : index
    %174 = vector.load %arg7[%c0_94, %c0_95, %c0_96] : memref<16x8x128xf32, #tpu.memory_space<vmem>>, vector<16x8x128xf32>
    tpu.vector_store %arg7[%c0_94, %c0_95, %c0_96], %173 {strides = array<i32>} : memref<16x8x128xf32, #tpu.memory_space<vmem>>, vector<16x8x128xf32>,
    return
  }
  func.func @transform_0(%arg0: i32, %arg1: i32) -> (i32, i32, i32) {
    %c0_i32 = arith.constant 0 : i32
    %c0_i32_0 = arith.constant 0 : i32
    return %arg1, %arg0, %c0_i32 : i32, i32, i32
  }
  func.func @transform_1(%arg0: i32, %arg1: i32) -> (i32, i32) {
    %c0_i32 = arith.constant 0 : i32
    %c0_i32_0 = arith.constant 0 : i32
    return %arg0, %c0_i32 : i32, i32
  }
  func.func @transform_2(%arg0: i32, %arg1: i32) -> (i32, i32) {
    %c0_i32 = arith.constant 0 : i32
    %c0_i32_0 = arith.constant 0 : i32
    %c0_i32_1 = arith.constant 0 : i32
    return %c0_i32, %c0_i32_0 : i32, i32
  }
  func.func @transform_3(%arg0: i32, %arg1: i32) -> (i32, i32) {
    %c0_i32 = arith.constant 0 : i32
    %c0_i32_0 = arith.constant 0 : i32
    %c0_i32_1 = arith.constant 0 : i32
    return %c0_i32, %c0_i32_0 : i32, i32
  }
  func.func @transform_4(%arg0: i32, %arg1: i32) -> (i32, i32) {
    %c0_i32 = arith.constant 0 : i32
    %c0_i32_0 = arith.constant 0 : i32
    %c0_i32_1 = arith.constant 0 : i32
    return %c0_i32, %c0_i32_0 : i32, i32
  }
  func.func @transform_5(%arg0: i32, %arg1: i32) -> (i32, i32, i32) {
    %c0_i32 = arith.constant 0 : i32
    %c0_i32_0 = arith.constant 0 : i32
    return %arg1, %arg0, %c0_i32 : i32, i32, i32
  }
  func.func @transform_6(%arg0: i32, %arg1: i32) -> (i32, i32) {
    %c0_i32 = arith.constant 0 : i32
    %c0_i32_0 = arith.constant 0 : i32
    return %arg0, %c0_i32 : i32, i32
  }
}

</mosaic_0001>

<llo_original>
// kernel: tpu_custom_call.1
$region0: #{tpu_custom_call.1}
  #allocation0 [shape = 'u32[]', space=smem, size = 0x4, offset = 0x4, fixed_abs, tag = 'smem constant byte address 0x4 - core index']
  #allocation1 [shape = 'u32[144,128]{1,0:T(1,128)}', space=vmem, size = 0x12000, scoped, tag = 'internal scratch']
  #allocation2 [shape = 'f32[16,8,128]{2,1,0:T(8,128)}', space=vmem, size = 0x10000, scoped, tag = 'scratch operand']
  %s0 = inlined_call_operand.hbm [shape: f32[16,8,128], index: 0, kind: input, shape index: {}]
  %s1 = inlined_call_operand.hbm [shape: f32[8,128], index: 1, kind: input, shape index: {}]
  %s2 = inlined_call_operand.hbm [shape: f32[128,128], index: 2, kind: input, shape index: {}]
  %s3 = inlined_call_operand.hbm [shape: f32[128,128], index: 3, kind: input, shape index: {}]
  %s4 = inlined_call_operand.vmem [shape: f32[1,128], index: 4, kind: input, shape index: {}]
  %s5 = inlined_call_operand.hbm [shape: f32[16,8,128], index: 5, kind: output, shape index: {0}]
  %s6 = inlined_call_operand.hbm [shape: f32[8,128], index: 6, kind: output, shape index: {1}]
  %7 = xla_tuple %s5, %s6
  %s8 = sld [smem:[#allocation0]]
  $region58: #{tpu_custom_call.1} parent=0
    _
  %s10 = ssub.s32 1, %s8
  %s11 = scalar_select 0, %s10, %s8
  $region1: #{tpu_custom_call.1} parent=0
    #allocation3 [shape = 'u8[65536]{0}', space=vmem, size = 0x10000, scoped, tag = 'input window, operand 0, single buffered']
    #allocation4 [shape = 's32[1]{0}', space=sflag, size = 0x4, scoped, tag = 'scoped memory for tpu_custom_call.1']
    #allocation5 [shape = 's32[1]{0}', space=sflag, size = 0x4, scoped, tag = 'scoped memory for tpu_custom_call.1']
    #allocation6 [shape = 'u8[4096]{0}', space=vmem, size = 0x1000, scoped, tag = 'input window, operand 1, single buffered']
    #allocation7 [shape = 's32[1]{0}', space=sflag, size = 0x4, scoped, tag = 'scoped memory for tpu_custom_call.1']
    #allocation8 [shape = 'u8[65536]{0}', space=vmem, size = 0x10000, scoped, tag = 'input window, operand 2, single buffered']
    #allocation9 [shape = 'u8[65536]{0}', space=vmem, size = 0x10000, scoped, tag = 'input window, operand 3, single buffered']
    #allocation10 [shape = 's32[1]{0}', space=sflag, size = 0x4, scoped, tag = 'scoped memory for tpu_custom_call.1']
    #allocation11 [shape = 'u8[65536]{0}', space=vmem, size = 0x10000, scoped, tag = 'output window, operand 0, single buffered']
    #allocation12 [shape = 'u8[4096]{0}', space=vmem, size = 0x1000, scoped, tag = 'output window, operand 1, single buffered']
    #allocation13 [shape = 's32[1]{0}', space=sflag, size = 0x4, scoped, tag = 'scoped memory for tpu_custom_call.1']
    %12 = vsyncpa [#allocation4], 0
    %13 = vsyncpa [#allocation7], 0
    %14 = vsyncpa [#allocation10], 0
    %15 = vsyncpa [#allocation5], 0
    %16 = vsyncpa [#allocation13], 0
    // Predicated region
    $region2: #{tpu_custom_call.1} parent=1 // pred_check
      _
    $region3: #{tpu_custom_call.1} parent=1 // pred_check_branch
      %18 = sbr.rel (0) target = $region5
    $region4: #{tpu_custom_call.1} parent=1 // pred_region
      %s20 = ssub.s32 2048, 2048
      %21 = vsyncadd [#allocation4], %s20
      %s22 = sshll.u32 [#allocation3], 4
      %s23 = int_to_ptr.vmem [resolvable:$true] %s22
      %28 = dma.hbm_to_vmem [thread:$0]  %s0, 2048, %s23, [#allocation4], 128, 128, 8
    $region5: #{tpu_custom_call.1} parent=1 // pred_fallthru
      _
    // Predicated region
    $region6: #{tpu_custom_call.1} parent=1 // pred_check
      _
    $region7: #{tpu_custom_call.1} parent=1 // pred_check_branch
      %30 = sbr.rel (0) target = $region9
    $region8: #{tpu_custom_call.1} parent=1 // pred_region
      %s32 = ssub.s32 128, 128
      %33 = vsyncadd [#allocation7], %s32
      %s35 = sshll.u32 [#allocation6], 4
      %s36 = int_to_ptr.vmem [resolvable:$true] %s35
      %38 = dma.hbm_to_vmem [thread:$0]  %s1, 128, %s36, [#allocation7]
    $region9: #{tpu_custom_call.1} parent=1 // pred_fallthru
      _
    // Predicated region
    $region10: #{tpu_custom_call.1} parent=1 // pred_check
      _
    $region11: #{tpu_custom_call.1} parent=1 // pred_check_branch
      %40 = sbr.rel (0) target = $region13
    $region12: #{tpu_custom_call.1} parent=1 // pred_region
      %s42 = ssub.s32 2048, 2048
      %43 = vsyncadd [#allocation7], %s42
      %s44 = sshll.u32 [#allocation8], 4
      %s45 = int_to_ptr.vmem [resolvable:$true] %s44
      %50 = dma.hbm_to_vmem [thread:$0]  %s2, 2048, %s45, [#allocation7], 128, 128, 8
    $region13: #{tpu_custom_call.1} parent=1 // pred_fallthru
      _
    // Predicated region
    $region14: #{tpu_custom_call.1} parent=1 // pred_check
      _
    $region15: #{tpu_custom_call.1} parent=1 // pred_check_branch
      %52 = sbr.rel (0) target = $region17
    $region16: #{tpu_custom_call.1} parent=1 // pred_region
      %s54 = ssub.s32 2048, 2048
      %55 = vsyncadd [#allocation10], %s54
      %s56 = sshll.u32 [#allocation9], 4
      %s57 = int_to_ptr.vmem [resolvable:$true] %s56
      %62 = dma.hbm_to_vmem [thread:$0]  %s3, 2048, %s57, [#allocation10], 128, 128, 8
    $region17: #{tpu_custom_call.1} parent=1 // pred_fallthru
      _
    // Predicated region
    $region18: #{tpu_custom_call.1} parent=1 // pred_check
      _
    $region19: #{tpu_custom_call.1} parent=1 // pred_check_branch
      %64 = sbr.rel (0) target = $region21
    $region20: #{tpu_custom_call.1} parent=1 // pred_region
      _
    $region21: #{tpu_custom_call.1} parent=1 // pred_fallthru
      _
    // Predicated region
    $region22: #{tpu_custom_call.1} parent=1 // pred_check
      _
    $region23: #{tpu_custom_call.1} parent=1 // pred_check_branch
      %66 = sbr.rel (0) target = $region25
    $region24: #{tpu_custom_call.1} parent=1 // pred_region
      %67 = dma.done [#allocation4], 2048
    $region25: #{tpu_custom_call.1} parent=1 // pred_fallthru
      _
    // Predicated region
    $region26: #{tpu_custom_call.1} parent=1 // pred_check
      _
    $region27: #{tpu_custom_call.1} parent=1 // pred_check_branch
      %69 = sbr.rel (0) target = $region29
    $region28: #{tpu_custom_call.1} parent=1 // pred_region
      %70 = dma.done [#allocation7], 128
    $region29: #{tpu_custom_call.1} parent=1 // pred_fallthru
      _
    // Predicated region
    $region30: #{tpu_custom_call.1} parent=1 // pred_check
      _
    $region31: #{tpu_custom_call.1} parent=1 // pred_check_branch
      %72 = sbr.rel (0) target = $region33
    $region32: #{tpu_custom_call.1} parent=1 // pred_region
      %73 = dma.done [#allocation7], 2048
    $region33: #{tpu_custom_call.1} parent=1 // pred_fallthru
      _
    // Predicated region
    $region34: #{tpu_custom_call.1} parent=1 // pred_check
      _
    $region35: #{tpu_custom_call.1} parent=1 // pred_check_branch
      %75 = sbr.rel (0) target = $region37
    $region36: #{tpu_custom_call.1} parent=1 // pred_region
      %76 = dma.done [#allocation10], 2048
    $region37: #{tpu_custom_call.1} parent=1 // pred_fallthru
      _
    %p77 = scmp.eq.s32.totalorder 0, 0
    // Predicated region
    $region38: #{tpu_custom_call.1} parent=1 // pred_check
      %p78 = pneg %p77
    $region39: #{tpu_custom_call.1} parent=1 // pred_check_branch
      %80 = sbr.rel (%p78) target = $region41
    $region40: #{tpu_custom_call.1} parent=1 // pred_region
      %v81 = vld [vmem:[#allocation6] sm:$0xff]
      %82 = vst [vmem:[#allocation12] sm:$0xff] %v81
    $region41: #{tpu_custom_call.1} parent=1 // pred_fallthru
      _
    %v83 = vld [vmem:[#allocation8] sm:$0xff]
    %v84 = vld [vmem:[#allocation8 + $0x8] sm:$0xff]
    %v85 = vld [vmem:[#allocation8 + $0x10] sm:$0xff]
    %v86 = vld [vmem:[#allocation8 + $0x18] sm:$0xff]
    %v87 = vld [vmem:[#allocation8 + $0x20] sm:$0xff]
    %v88 = vld [vmem:[#allocation8 + $0x28] sm:$0xff]
    %v89 = vld [vmem:[#allocation8 + $0x30] sm:$0xff]
    %v90 = vld [vmem:[#allocation8 + $0x38] sm:$0xff]
    %v91 = vld [vmem:[#allocation8 + $0x40] sm:$0xff]
    %v92 = vld [vmem:[#allocation8 + $0x48] sm:$0xff]
    %v93 = vld [vmem:[#allocation8 + $0x50] sm:$0xff]
    %v94 = vld [vmem:[#allocation8 + $0x58] sm:$0xff]
    %v95 = vld [vmem:[#allocation8 + $0x60] sm:$0xff]
    %v96 = vld [vmem:[#allocation8 + $0x68] sm:$0xff]
    %v97 = vld [vmem:[#allocation8 + $0x70] sm:$0xff]
    %v98 = vld [vmem:[#allocation8 + $0x78] sm:$0xff]
    %v99 = vld [vmem:[#allocation12] sm:$0xff]
    %v100 = vld [vmem:[#allocation3] sm:$0xff]
    %101 = vmatprep.subr.mxu0 0.0
    %102 = vmatpush1.msra.mxu0 %v83
    %103 = vmatprep.subr.mxu0 0.0
    %104 = vmatpush1.msra.mxu0 %v84
    %105 = vmatprep.subr.mxu0 0.0
    %106 = vmatpush1.msra.mxu0 %v85
    %107 = vmatprep.subr.mxu0 0.0
    %108 = vmatpush1.msra.mxu0 %v86
    %109 = vmatprep.subr.mxu0 0.0
    %110 = vmatpush1.msra.mxu0 %v87
    %111 = vmatprep.subr.mxu0 0.0
    %112 = vmatpush1.msra.mxu0 %v88
    %113 = vmatprep.subr.mxu0 0.0
    %114 = vmatpush1.msra.mxu0 %v89
    %115 = vmatprep.subr.mxu0 0.0
    %116 = vmatpush1.msra.mxu0 %v90
    %117 = vmatprep.subr.mxu0 0.0
    %118 = vmatpush1.msra.mxu0 %v91
    %119 = vmatprep.subr.mxu0 0.0
    %120 = vmatpush1.msra.mxu0 %v92
    %121 = vmatprep.subr.mxu0 0.0
    %122 = vmatpush1.msra.mxu0 %v93
    %123 = vmatprep.subr.mxu0 0.0
    %124 = vmatpush1.msra.mxu0 %v94
    %125 = vmatprep.subr.mxu0 0.0
    %126 = vmatpush1.msra.mxu0 %v95
    %127 = vmatprep.subr.mxu0 0.0
    %128 = vmatpush1.msra.mxu0 %v96
    %129 = vmatprep.subr.mxu0 0.0
    %130 = vmatpush1.msra.mxu0 %v97
    %131 = vmatprep.subr.mxu0 0.0
    %132 = vmatpush1.msra.mxu0 %v98
    %133 = vmatprep.subr.mxu0 0.0
    %134 = vmatpush1.msra.mxu0 0.0
    %135 = vmatprep.subr.mxu0 0.0
    %136 = vmatpush1.msra.mxu0 0.0
    %137 = vmatprep.subr.mxu0 0.0
    %138 = vmatpush1.msra.mxu0 0.0
    %139 = vmatprep.subr.mxu0 0.0
    %140 = vmatpush1.msra.mxu0 0.0
    %141 = vmatprep.subr.mxu0 0.0
    %142 = vmatpush1.msra.mxu0 0.0
    %143 = vmatprep.subr.mxu0 0.0
    %144 = vmatpush1.msra.mxu0 0.0
    %145 = vmatprep.subr.mxu0 0.0
    %146 = vmatpush1.msra.mxu0 0.0
    %147 = vmatprep.subr.mxu0 0.0
    %148 = vmatpush1.msra.mxu0 0.0
    %149 = vmatprep.subr.mxu0 0.0
    %150 = vmatpush1.msra.mxu0 0.0
    %151 = vmatprep.subr.mxu0 0.0
    %152 = vmatpush1.msra.mxu0 0.0
    %153 = vmatprep.subr.mxu0 0.0
    %154 = vmatpush1.msra.mxu0 0.0
    %155 = vmatprep.subr.mxu0 0.0
    %156 = vmatpush1.msra.mxu0 0.0
    %157 = vmatprep.subr.mxu0 0.0
    %158 = vmatpush1.msra.mxu0 0.0
    %159 = vmatprep.subr.mxu0 0.0
    %160 = vmatpush1.msra.mxu0 0.0
    %161 = vmatprep.subr.mxu0 0.0
    %162 = vmatpush1.msra.mxu0 0.0
    %163 = vmatprep.subr.mxu0 0.0
    %164 = vmatpush1.msra.mxu0 0.0
    %165 = vmatprep.mubr.f32.mxu0 0.0
    %166 = vmatmul.mubr.f32.gmra.mrb[0].mxu0 %v99
    %v167 = vpop.f32.mrb[0].mxu0
    %v168 = vadd.f32 0.0, %v167
    %v169 = vpop.f32.mrb[0].mxu0
    %170 = vdwg.mxu0
    %v171 = vadd.f32 %v100, %v168
    %v172 = vtanh.pop %v171
    %173 = vst [vmem:[#allocation2] sm:$0xff] %v172
    %s174 = scalar_lea.vmem [#allocation3], 8
    %v175 = vld [vmem:[%s174] sm:$0xff]
    %176 = vmatprep.subr.mxu0 0.0
    %177 = vmatpush1.msra.mxu0 %v83
    %178 = vmatprep.subr.mxu0 0.0
    %179 = vmatpush1.msra.mxu0 %v84
    %180 = vmatprep.subr.mxu0 0.0
    %181 = vmatpush1.msra.mxu0 %v85
    %182 = vmatprep.subr.mxu0 0.0
    %183 = vmatpush1.msra.mxu0 %v86
    %184 = vmatprep.subr.mxu0 0.0
    %185 = vmatpush1.msra.mxu0 %v87
    %186 = vmatprep.subr.mxu0 0.0
    %187 = vmatpush1.msra.mxu0 %v88
    %188 = vmatprep.subr.mxu0 0.0
    %189 = vmatpush1.msra.mxu0 %v89
    %190 = vmatprep.subr.mxu0 0.0
    %191 = vmatpush1.msra.mxu0 %v90
    %192 = vmatprep.subr.mxu0 0.0
    %193 = vmatpush1.msra.mxu0 %v91
    %194 = vmatprep.subr.mxu0 0.0
    %195 = vmatpush1.msra.mxu0 %v92
    %196 = vmatprep.subr.mxu0 0.0
    %197 = vmatpush1.msra.mxu0 %v93
    %198 = vmatprep.subr.mxu0 0.0
    %199 = vmatpush1.msra.mxu0 %v94
    %200 = vmatprep.subr.mxu0 0.0
    %201 = vmatpush1.msra.mxu0 %v95
    %202 = vmatprep.subr.mxu0 0.0
    %203 = vmatpush1.msra.mxu0 %v96
    %204 = vmatprep.subr.mxu0 0.0
    %205 = vmatpush1.msra.mxu0 %v97
    %206 = vmatprep.subr.mxu0 0.0
    %207 = vmatpush1.msra.mxu0 %v98
    %208 = vmatprep.subr.mxu0 0.0
    %209 = vmatpush1.msra.mxu0 0.0
    %210 = vmatprep.subr.mxu0 0.0
    %211 = vmatpush1.msra.mxu0 0.0
    %212 = vmatprep.subr.mxu0 0.0
    %213 = vmatpush1.msra.mxu0 0.0
    %214 = vmatprep.subr.mxu0 0.0
    %215 = vmatpush1.msra.mxu0 0.0
    %216 = vmatprep.subr.mxu0 0.0
    %217 = vmatpush1.msra.mxu0 0.0
    %218 = vmatprep.subr.mxu0 0.0
    %219 = vmatpush1.msra.mxu0 0.0
    %220 = vmatprep.subr.mxu0 0.0
    %221 = vmatpush1.msra.mxu0 0.0
    %222 = vmatprep.subr.mxu0 0.0
    %223 = vmatpush1.msra.mxu0 0.0
    %224 = vmatprep.subr.mxu0 0.0
    %225 = vmatpush1.msra.mxu0 0.0
    %226 = vmatprep.subr.mxu0 0.0
    %227 = vmatpush1.msra.mxu0 0.0
    %228 = vmatprep.subr.mxu0 0.0
    %229 = vmatpush1.msra.mxu0 0.0
    %230 = vmatprep.subr.mxu0 0.0
    %231 = vmatpush1.msra.mxu0 0.0
    %232 = vmatprep.subr.mxu0 0.0
    %233 = vmatpush1.msra.mxu0 0.0
    %234 = vmatprep.subr.mxu0 0.0
    %235 = vmatpush1.msra.mxu0 0.0
    %236 = vmatprep.subr.mxu0 0.0
    %237 = vmatpush1.msra.mxu0 0.0
    %238 = vmatprep.subr.mxu0 0.0
    %239 = vmatpush1.msra.mxu0 0.0
    %240 = vmatprep.mubr.f32.mxu0 0.0
    %241 = vmatmul.mubr.f32.gmra.mrb[0].mxu0 %v172
    %v242 = vpop.f32.mrb[0].mxu0
    %v243 = vadd.f32 0.0, %v242
    %v244 = vpop.f32.mrb[0].mxu0
    %245 = vdwg.mxu0
    %v246 = vadd.f32 %v175, %v243
    %v247 = vtanh.pop %v246
    %s248 = scalar_lea.vmem [#allocation2], 8
    %249 = vst [vmem:[%s248] sm:$0xff] %v247
    %s250 = scalar_lea.vmem [#allocation3], 16
    %v251 = vld [vmem:[%s250] sm:$0xff]
    %252 = vmatprep.subr.mxu0 0.0
    %253 = vmatpush1.msra.mxu0 %v83
    %254 = vmatprep.subr.mxu0 0.0
    %255 = vmatpush1.msra.mxu0 %v84
    %256 = vmatprep.subr.mxu0 0.0
    %257 = vmatpush1.msra.mxu0 %v85
    %258 = vmatprep.subr.mxu0 0.0
    %259 = vmatpush1.msra.mxu0 %v86
    %260 = vmatprep.subr.mxu0 0.0
    %261 = vmatpush1.msra.mxu0 %v87
    %262 = vmatprep.subr.mxu0 0.0
    %263 = vmatpush1.msra.mxu0 %v88
    %264 = vmatprep.subr.mxu0 0.0
    %265 = vmatpush1.msra.mxu0 %v89
    %266 = vmatprep.subr.mxu0 0.0
    %267 = vmatpush1.msra.mxu0 %v90
    %268 = vmatprep.subr.mxu0 0.0
    %269 = vmatpush1.msra.mxu0 %v91
    %270 = vmatprep.subr.mxu0 0.0
    %271 = vmatpush1.msra.mxu0 %v92
    %272 = vmatprep.subr.mxu0 0.0
    %273 = vmatpush1.msra.mxu0 %v93
    %274 = vmatprep.subr.mxu0 0.0
    %275 = vmatpush1.msra.mxu0 %v94
    %276 = vmatprep.subr.mxu0 0.0
    %277 = vmatpush1.msra.mxu0 %v95
    %278 = vmatprep.subr.mxu0 0.0
    %279 = vmatpush1.msra.mxu0 %v96
    %280 = vmatprep.subr.mxu0 0.0
    %281 = vmatpush1.msra.mxu0 %v97
    %282 = vmatprep.subr.mxu0 0.0
    %283 = vmatpush1.msra.mxu0 %v98
    %284 = vmatprep.subr.mxu0 0.0
    %285 = vmatpush1.msra.mxu0 0.0
    %286 = vmatprep.subr.mxu0 0.0
    %287 = vmatpush1.msra.mxu0 0.0
    %288 = vmatprep.subr.mxu0 0.0
    %289 = vmatpush1.msra.mxu0 0.0
    %290 = vmatprep.subr.mxu0 0.0
    %291 = vmatpush1.msra.mxu0 0.0
    %292 = vmatprep.subr.mxu0 0.0
    %293 = vmatpush1.msra.mxu0 0.0
    %294 = vmatprep.subr.mxu0 0.0
    %295 = vmatpush1.msra.mxu0 0.0
    %296 = vmatprep.subr.mxu0 0.0
    %297 = vmatpush1.msra.mxu0 0.0
    %298 = vmatprep.subr.mxu0 0.0
    %299 = vmatpush1.msra.mxu0 0.0
    %300 = vmatprep.subr.mxu0 0.0
    %301 = vmatpush1.msra.mxu0 0.0
    %302 = vmatprep.subr.mxu0 0.0
    %303 = vmatpush1.msra.mxu0 0.0
    %304 = vmatprep.subr.mxu0 0.0
    %305 = vmatpush1.msra.mxu0 0.0
    %306 = vmatprep.subr.mxu0 0.0
    %307 = vmatpush1.msra.mxu0 0.0
    %308 = vmatprep.subr.mxu0 0.0
    %309 = vmatpush1.msra.mxu0 0.0
    %310 = vmatprep.subr.mxu0 0.0
    %311 = vmatpush1.msra.mxu0 0.0
    %312 = vmatprep.subr.mxu0 0.0
    %313 = vmatpush1.msra.mxu0 0.0
    %314 = vmatprep.subr.mxu0 0.0
    %315 = vmatpush1.msra.mxu0 0.0
    %316 = vmatprep.mubr.f32.mxu0 0.0
    %317 = vmatmul.mubr.f32.gmra.mrb[0].mxu0 %v247
    %v318 = vpop.f32.mrb[0].mxu0
    %v319 = vadd.f32 0.0, %v318
    %v320 = vpop.f32.mrb[0].mxu0
    %321 = vdwg.mxu0
    %v322 = vadd.f32 %v251, %v319
    %v323 = vtanh.pop %v322
    %s324 = scalar_lea.vmem [#allocation2], 16
    %325 = vst [vmem:[%s324] sm:$0xff] %v323
    %s326 = scalar_lea.vmem [#allocation3], 24
    %v327 = vld [vmem:[%s326] sm:$0xff]
    %328 = vmatprep.subr.mxu0 0.0
    %329 = vmatpush1.msra.mxu0 %v83
    %330 = vmatprep.subr.mxu0 0.0
    %331 = vmatpush1.msra.mxu0 %v84
    %332 = vmatprep.subr.mxu0 0.0
    %333 = vmatpush1.msra.mxu0 %v85
    %334 = vmatprep.subr.mxu0 0.0
    %335 = vmatpush1.msra.mxu0 %v86
    %336 = vmatprep.subr.mxu0 0.0
    %337 = vmatpush1.msra.mxu0 %v87
    %338 = vmatprep.subr.mxu0 0.0
    %339 = vmatpush1.msra.mxu0 %v88
    %340 = vmatprep.subr.mxu0 0.0
    %341 = vmatpush1.msra.mxu0 %v89
    %342 = vmatprep.subr.mxu0 0.0
    %343 = vmatpush1.msra.mxu0 %v90
    %344 = vmatprep.subr.mxu0 0.0
    %345 = vmatpush1.msra.mxu0 %v91
    %346 = vmatprep.subr.mxu0 0.0
    %347 = vmatpush1.msra.mxu0 %v92
    %348 = vmatprep.subr.mxu0 0.0
    %349 = vmatpush1.msra.mxu0 %v93
    %350 = vmatprep.subr.mxu0 0.0
    %351 = vmatpush1.msra.mxu0 %v94
    %352 = vmatprep.subr.mxu0 0.0
    %353 = vmatpush1.msra.mxu0 %v95
    %354 = vmatprep.subr.mxu0 0.0
    %355 = vmatpush1.msra.mxu0 %v96
    %356 = vmatprep.subr.mxu0 0.0
    %357 = vmatpush1.msra.mxu0 %v97
    %358 = vmatprep.subr.mxu0 0.0
    %359 = vmatpush1.msra.mxu0 %v98
    %360 = vmatprep.subr.mxu0 0.0
    %361 = vmatpush1.msra.mxu0 0.0
    %362 = vmatprep.subr.mxu0 0.0
    %363 = vmatpush1.msra.mxu0 0.0
    %364 = vmatprep.subr.mxu0 0.0
    %365 = vmatpush1.msra.mxu0 0.0
    %366 = vmatprep.subr.mxu0 0.0
    %367 = vmatpush1.msra.mxu0 0.0
    %368 = vmatprep.subr.mxu0 0.0
    %369 = vmatpush1.msra.mxu0 0.0
    %370 = vmatprep.subr.mxu0 0.0
    %371 = vmatpush1.msra.mxu0 0.0
    %372 = vmatprep.subr.mxu0 0.0
    %373 = vmatpush1.msra.mxu0 0.0
    %374 = vmatprep.subr.mxu0 0.0
    %375 = vmatpush1.msra.mxu0 0.0
    %376 = vmatprep.subr.mxu0 0.0
    %377 = vmatpush1.msra.mxu0 0.0
    %378 = vmatprep.subr.mxu0 0.0
    %379 = vmatpush1.msra.mxu0 0.0
    %380 = vmatprep.subr.mxu0 0.0
    %381 = vmatpush1.msra.mxu0 0.0
    %382 = vmatprep.subr.mxu0 0.0
    %383 = vmatpush1.msra.mxu0 0.0
    %384 = vmatprep.subr.mxu0 0.0
    %385 = vmatpush1.msra.mxu0 0.0
    %386 = vmatprep.subr.mxu0 0.0
    %387 = vmatpush1.msra.mxu0 0.0
    %388 = vmatprep.subr.mxu0 0.0
    %389 = vmatpush1.msra.mxu0 0.0
    %390 = vmatprep.subr.mxu0 0.0
    %391 = vmatpush1.msra.mxu0 0.0
    %392 = vmatprep.mubr.f32.mxu0 0.0
    %393 = vmatmul.mubr.f32.gmra.mrb[0].mxu0 %v323
    %v394 = vpop.f32.mrb[0].mxu0
    %v395 = vadd.f32 0.0, %v394
    %v396 = vpop.f32.mrb[0].mxu0
    %397 = vdwg.mxu0
    %v398 = vadd.f32 %v327, %v395
    %v399 = vtanh.pop %v398
    %s400 = scalar_lea.vmem [#allocation2], 24
    %401 = vst [vmem:[%s400] sm:$0xff] %v399
    %s402 = scalar_lea.vmem [#allocation3], 32
    %v403 = vld [vmem:[%s402] sm:$0xff]
    %404 = vmatprep.subr.mxu0 0.0
    %405 = vmatpush1.msra.mxu0 %v83
    %406 = vmatprep.subr.mxu0 0.0
    %407 = vmatpush1.msra.mxu0 %v84
    %408 = vmatprep.subr.mxu0 0.0
    %409 = vmatpush1.msra.mxu0 %v85
    %410 = vmatprep.subr.mxu0 0.0
    %411 = vmatpush1.msra.mxu0 %v86
    %412 = vmatprep.subr.mxu0 0.0
    %413 = vmatpush1.msra.mxu0 %v87
    %414 = vmatprep.subr.mxu0 0.0
    %415 = vmatpush1.msra.mxu0 %v88
    %416 = vmatprep.subr.mxu0 0.0
    %417 = vmatpush1.msra.mxu0 %v89
    %418 = vmatprep.subr.mxu0 0.0
    %419 = vmatpush1.msra.mxu0 %v90
    %420 = vmatprep.subr.mxu0 0.0
    %421 = vmatpush1.msra.mxu0 %v91
    %422 = vmatprep.subr.mxu0 0.0
    %423 = vmatpush1.msra.mxu0 %v92
    %424 = vmatprep.subr.mxu0 0.0
    %425 = vmatpush1.msra.mxu0 %v93
    %426 = vmatprep.subr.mxu0 0.0
    %427 = vmatpush1.msra.mxu0 %v94
    %428 = vmatprep.subr.mxu0 0.0
    %429 = vmatpush1.msra.mxu0 %v95
    %430 = vmatprep.subr.mxu0 0.0
    %431 = vmatpush1.msra.mxu0 %v96
    %432 = vmatprep.subr.mxu0 0.0
    %433 = vmatpush1.msra.mxu0 %v97
    %434 = vmatprep.subr.mxu0 0.0
    %435 = vmatpush1.msra.mxu0 %v98
    %436 = vmatprep.subr.mxu0 0.0
    %437 = vmatpush1.msra.mxu0 0.0
    %438 = vmatprep.subr.mxu0 0.0
    %439 = vmatpush1.msra.mxu0 0.0
    %440 = vmatprep.subr.mxu0 0.0
    %441 = vmatpush1.msra.mxu0 0.0
    %442 = vmatprep.subr.mxu0 0.0
    %443 = vmatpush1.msra.mxu0 0.0
    %444 = vmatprep.subr.mxu0 0.0
    %445 = vmatpush1.msra.mxu0 0.0
    %446 = vmatprep.subr.mxu0 0.0
    %447 = vmatpush1.msra.mxu0 0.0
    %448 = vmatprep.subr.mxu0 0.0
    %449 = vmatpush1.msra.mxu0 0.0
    %450 = vmatprep.subr.mxu0 0.0
    %451 = vmatpush1.msra.mxu0 0.0
    %452 = vmatprep.subr.mxu0 0.0
    %453 = vmatpush1.msra.mxu0 0.0
    %454 = vmatprep.subr.mxu0 0.0
    %455 = vmatpush1.msra.mxu0 0.0
    %456 = vmatprep.subr.mxu0 0.0
    %457 = vmatpush1.msra.mxu0 0.0
    %458 = vmatprep.subr.mxu0 0.0
    %459 = vmatpush1.msra.mxu0 0.0
    %460 = vmatprep.subr.mxu0 0.0
    %461 = vmatpush1.msra.mxu0 0.0
    %462 = vmatprep.subr.mxu0 0.0
    %463 = vmatpush1.msra.mxu0 0.0
    %464 = vmatprep.subr.mxu0 0.0
    %465 = vmatpush1.msra.mxu0 0.0
    %466 = vmatprep.subr.mxu0 0.0
    %467 = vmatpush1.msra.mxu0 0.0
    %468 = vmatprep.mubr.f32.mxu0 0.0
    %469 = vmatmul.mubr.f32.gmra.mrb[0].mxu0 %v399
    %v470 = vpop.f32.mrb[0].mxu0
    %v471 = vadd.f32 0.0, %v470
    %v472 = vpop.f32.mrb[0].mxu0
    %473 = vdwg.mxu0
    %v474 = vadd.f32 %v403, %v471
    %v475 = vtanh.pop %v474
    %s476 = scalar_lea.vmem [#allocation2], 32
    %477 = vst [vmem:[%s476] sm:$0xff] %v475
    %s478 = scalar_lea.vmem [#allocation3], 40
    %v479 = vld [vmem:[%s478] sm:$0xff]
    %480 = vmatprep.subr.mxu0 0.0
    %481 = vmatpush1.msra.mxu0 %v83
    %482 = vmatprep.subr.mxu0 0.0
    %483 = vmatpush1.msra.mxu0 %v84
    %484 = vmatprep.subr.mxu0 0.0
    %485 = vmatpush1.msra.mxu0 %v85
    %486 = vmatprep.subr.mxu0 0.0
    %487 = vmatpush1.msra.mxu0 %v86
    %488 = vmatprep.subr.mxu0 0.0
    %489 = vmatpush1.msra.mxu0 %v87
    %490 = vmatprep.subr.mxu0 0.0
    %491 = vmatpush1.msra.mxu0 %v88
    %492 = vmatprep.subr.mxu0 0.0
    %493 = vmatpush1.msra.mxu0 %v89
    %494 = vmatprep.subr.mxu0 0.0
    %495 = vmatpush1.msra.mxu0 %v90
    %496 = vmatprep.subr.mxu0 0.0
    %497 = vmatpush1.msra.mxu0 %v91
    %498 = vmatprep.subr.mxu0 0.0
    %499 = vmatpush1.msra.mxu0 %v92
    %500 = vmatprep.subr.mxu0 0.0
    %501 = vmatpush1.msra.mxu0 %v93
    %502 = vmatprep.subr.mxu0 0.0
    %503 = vmatpush1.msra.mxu0 %v94
    %504 = vmatprep.subr.mxu0 0.0
    %505 = vmatpush1.msra.mxu0 %v95
    %506 = vmatprep.subr.mxu0 0.0
    %507 = vmatpush1.msra.mxu0 %v96
    %508 = vmatprep.subr.mxu0 0.0
    %509 = vmatpush1.msra.mxu0 %v97
    %510 = vmatprep.subr.mxu0 0.0
    %511 = vmatpush1.msra.mxu0 %v98
    %512 = vmatprep.subr.mxu0 0.0
    %513 = vmatpush1.msra.mxu0 0.0
    %514 = vmatprep.subr.mxu0 0.0
    %515 = vmatpush1.msra.mxu0 0.0
    %516 = vmatprep.subr.mxu0 0.0
    %517 = vmatpush1.msra.mxu0 0.0
    %518 = vmatprep.subr.mxu0 0.0
    %519 = vmatpush1.msra.mxu0 0.0
    %520 = vmatprep.subr.mxu0 0.0
    %521 = vmatpush1.msra.mxu0 0.0
    %522 = vmatprep.subr.mxu0 0.0
    %523 = vmatpush1.msra.mxu0 0.0
    %524 = vmatprep.subr.mxu0 0.0
    %525 = vmatpush1.msra.mxu0 0.0
    %526 = vmatprep.subr.mxu0 0.0
    %527 = vmatpush1.msra.mxu0 0.0
    %528 = vmatprep.subr.mxu0 0.0
    %529 = vmatpush1.msra.mxu0 0.0
    %530 = vmatprep.subr.mxu0 0.0
    %531 = vmatpush1.msra.mxu0 0.0
    %532 = vmatprep.subr.mxu0 0.0
    %533 = vmatpush1.msra.mxu0 0.0
    %534 = vmatprep.subr.mxu0 0.0
    %535 = vmatpush1.msra.mxu0 0.0
    %536 = vmatprep.subr.mxu0 0.0
    %537 = vmatpush1.msra.mxu0 0.0
    %538 = vmatprep.subr.mxu0 0.0
    %539 = vmatpush1.msra.mxu0 0.0
    %540 = vmatprep.subr.mxu0 0.0
    %541 = vmatpush1.msra.mxu0 0.0
    %542 = vmatprep.subr.mxu0 0.0
    %543 = vmatpush1.msra.mxu0 0.0
    %544 = vmatprep.mubr.f32.mxu0 0.0
    %545 = vmatmul.mubr.f32.gmra.mrb[0].mxu0 %v475
    %v546 = vpop.f32.mrb[0].mxu0
    %v547 = vadd.f32 0.0, %v546
    %v548 = vpop.f32.mrb[0].mxu0
    %549 = vdwg.mxu0
    %v550 = vadd.f32 %v479, %v547
    %v551 = vtanh.pop %v550
    %s552 = scalar_lea.vmem [#allocation2], 40
    %553 = vst [vmem:[%s552] sm:$0xff] %v551
    %s554 = scalar_lea.vmem [#allocation3], 48
    %v555 = vld [vmem:[%s554] sm:$0xff]
    %556 = vmatprep.subr.mxu0 0.0
    %557 = vmatpush1.msra.mxu0 %v83
    %558 = vmatprep.subr.mxu0 0.0
    %559 = vmatpush1.msra.mxu0 %v84
    %560 = vmatprep.subr.mxu0 0.0
    %561 = vmatpush1.msra.mxu0 %v85
    %562 = vmatprep.subr.mxu0 0.0
    %563 = vmatpush1.msra.mxu0 %v86
    %564 = vmatprep.subr.mxu0 0.0
    %565 = vmatpush1.msra.mxu0 %v87
    %566 = vmatprep.subr.mxu0 0.0
    %567 = vmatpush1.msra.mxu0 %v88
    %568 = vmatprep.subr.mxu0 0.0
    %569 = vmatpush1.msra.mxu0 %v89
    %570 = vmatprep.subr.mxu0 0.0
    %571 = vmatpush1.msra.mxu0 %v90
    %572 = vmatprep.subr.mxu0 0.0
    %573 = vmatpush1.msra.mxu0 %v91
    %574 = vmatprep.subr.mxu0 0.0
    %575 = vmatpush1.msra.mxu0 %v92
    %576 = vmatprep.subr.mxu0 0.0
    %577 = vmatpush1.msra.mxu0 %v93
    %578 = vmatprep.subr.mxu0 0.0
    %579 = vmatpush1.msra.mxu0 %v94
    %580 = vmatprep.subr.mxu0 0.0
    %581 = vmatpush1.msra.mxu0 %v95
    %582 = vmatprep.subr.mxu0 0.0
    %583 = vmatpush1.msra.mxu0 %v96
    %584 = vmatprep.subr.mxu0 0.0
    %585 = vmatpush1.msra.mxu0 %v97
    %586 = vmatprep.subr.mxu0 0.0
    %587 = vmatpush1.msra.mxu0 %v98
    %588 = vmatprep.subr.mxu0 0.0
    %589 = vmatpush1.msra.mxu0 0.0
    %590 = vmatprep.subr.mxu0 0.0
    %591 = vmatpush1.msra.mxu0 0.0
    %592 = vmatprep.subr.mxu0 0.0
    %593 = vmatpush1.msra.mxu0 0.0
    %594 = vmatprep.subr.mxu0 0.0
    %595 = vmatpush1.msra.mxu0 0.0
    %596 = vmatprep.subr.mxu0 0.0
    %597 = vmatpush1.msra.mxu0 0.0
    %598 = vmatprep.subr.mxu0 0.0
    %599 = vmatpush1.msra.mxu0 0.0
    %600 = vmatprep.subr.mxu0 0.0
    %601 = vmatpush1.msra.mxu0 0.0
    %602 = vmatprep.subr.mxu0 0.0
    %603 = vmatpush1.msra.mxu0 0.0
    %604 = vmatprep.subr.mxu0 0.0
    %605 = vmatpush1.msra.mxu0 0.0
    %606 = vmatprep.subr.mxu0 0.0
    %607 = vmatpush1.msra.mxu0 0.0
    %608 = vmatprep.subr.mxu0 0.0
    %609 = vmatpush1.msra.mxu0 0.0
    %610 = vmatprep.subr.mxu0 0.0
    %611 = vmatpush1.msra.mxu0 0.0
    %612 = vmatprep.subr.mxu0 0.0
    %613 = vmatpush1.msra.mxu0 0.0
    %614 = vmatprep.subr.mxu0 0.0
    %615 = vmatpush1.msra.mxu0 0.0
    %616 = vmatprep.subr.mxu0 0.0
    %617 = vmatpush1.msra.mxu0 0.0
    %618 = vmatprep.subr.mxu0 0.0
    %619 = vmatpush1.msra.mxu0 0.0
    %620 = vmatprep.mubr.f32.mxu0 0.0
    %621 = vmatmul.mubr.f32.gmra.mrb[0].mxu0 %v551
    %v622 = vpop.f32.mrb[0].mxu0
    %v623 = vadd.f32 0.0, %v622
    %v624 = vpop.f32.mrb[0].mxu0
    %625 = vdwg.mxu0
    %v626 = vadd.f32 %v555, %v623
    %v627 = vtanh.pop %v626
    %s628 = scalar_lea.vmem [#allocation2], 48
    %629 = vst [vmem:[%s628] sm:$0xff] %v627
    %s630 = scalar_lea.vmem [#allocation3], 56
    %v631 = vld [vmem:[%s630] sm:$0xff]
    %632 = vmatprep.subr.mxu0 0.0
    %633 = vmatpush1.msra.mxu0 %v83
    %634 = vmatprep.subr.mxu0 0.0
    %635 = vmatpush1.msra.mxu0 %v84
    %636 = vmatprep.subr.mxu0 0.0
    %637 = vmatpush1.msra.mxu0 %v85
    %638 = vmatprep.subr.mxu0 0.0
    %639 = vmatpush1.msra.mxu0 %v86
    %640 = vmatprep.subr.mxu0 0.0
    %641 = vmatpush1.msra.mxu0 %v87
    %642 = vmatprep.subr.mxu0 0.0
    %643 = vmatpush1.msra.mxu0 %v88
    %644 = vmatprep.subr.mxu0 0.0
    %645 = vmatpush1.msra.mxu0 %v89
    %646 = vmatprep.subr.mxu0 0.0
    %647 = vmatpush1.msra.mxu0 %v90
    %648 = vmatprep.subr.mxu0 0.0
    %649 = vmatpush1.msra.mxu0 %v91
    %650 = vmatprep.subr.mxu0 0.0
    %651 = vmatpush1.msra.mxu0 %v92
    %652 = vmatprep.subr.mxu0 0.0
    %653 = vmatpush1.msra.mxu0 %v93
    %654 = vmatprep.subr.mxu0 0.0
    %655 = vmatpush1.msra.mxu0 %v94
    %656 = vmatprep.subr.mxu0 0.0
    %657 = vmatpush1.msra.mxu0 %v95
    %658 = vmatprep.subr.mxu0 0.0
    %659 = vmatpush1.msra.mxu0 %v96
    %660 = vmatprep.subr.mxu0 0.0
    %661 = vmatpush1.msra.mxu0 %v97
    %662 = vmatprep.subr.mxu0 0.0
    %663 = vmatpush1.msra.mxu0 %v98
    %664 = vmatprep.subr.mxu0 0.0
    %665 = vmatpush1.msra.mxu0 0.0
    %666 = vmatprep.subr.mxu0 0.0
    %667 = vmatpush1.msra.mxu0 0.0
    %668 = vmatprep.subr.mxu0 0.0
    %669 = vmatpush1.msra.mxu0 0.0
    %670 = vmatprep.subr.mxu0 0.0
    %671 = vmatpush1.msra.mxu0 0.0
    %672 = vmatprep.subr.mxu0 0.0
    %673 = vmatpush1.msra.mxu0 0.0
    %674 = vmatprep.subr.mxu0 0.0
    %675 = vmatpush1.msra.mxu0 0.0
    %676 = vmatprep.subr.mxu0 0.0
    %677 = vmatpush1.msra.mxu0 0.0
    %678 = vmatprep.subr.mxu0 0.0
    %679 = vmatpush1.msra.mxu0 0.0
    %680 = vmatprep.subr.mxu0 0.0
    %681 = vmatpush1.msra.mxu0 0.0
    %682 = vmatprep.subr.mxu0 0.0
    %683 = vmatpush1.msra.mxu0 0.0
    %684 = vmatprep.subr.mxu0 0.0
    %685 = vmatpush1.msra.mxu0 0.0
    %686 = vmatprep.subr.mxu0 0.0
    %687 = vmatpush1.msra.mxu0 0.0
    %688 = vmatprep.subr.mxu0 0.0
    %689 = vmatpush1.msra.mxu0 0.0
    %690 = vmatprep.subr.mxu0 0.0
    %691 = vmatpush1.msra.mxu0 0.0
    %692 = vmatprep.subr.mxu0 0.0
    %693 = vmatpush1.msra.mxu0 0.0
    %694 = vmatprep.subr.mxu0 0.0
    %695 = vmatpush1.msra.mxu0 0.0
    %696 = vmatprep.mubr.f32.mxu0 0.0
    %697 = vmatmul.mubr.f32.gmra.mrb[0].mxu0 %v627
    %v698 = vpop.f32.mrb[0].mxu0
    %v699 = vadd.f32 0.0, %v698
    %v700 = vpop.f32.mrb[0].mxu0
    %701 = vdwg.mxu0
    %v702 = vadd.f32 %v631, %v699
    %v703 = vtanh.pop %v702
    %s704 = scalar_lea.vmem [#allocation2], 56
    %705 = vst [vmem:[%s704] sm:$0xff] %v703
    %s706 = scalar_lea.vmem [#allocation3], 64
    %v707 = vld [vmem:[%s706] sm:$0xff]
    %708 = vmatprep.subr.mxu0 0.0
    %709 = vmatpush1.msra.mxu0 %v83
    %710 = vmatprep.subr.mxu0 0.0
    %711 = vmatpush1.msra.mxu0 %v84
    %712 = vmatprep.subr.mxu0 0.0
    %713 = vmatpush1.msra.mxu0 %v85
    %714 = vmatprep.subr.mxu0 0.0
    %715 = vmatpush1.msra.mxu0 %v86
    %716 = vmatprep.subr.mxu0 0.0
    %717 = vmatpush1.msra.mxu0 %v87
    %718 = vmatprep.subr.mxu0 0.0
    %719 = vmatpush1.msra.mxu0 %v88
    %720 = vmatprep.subr.mxu0 0.0
    %721 = vmatpush1.msra.mxu0 %v89
    %722 = vmatprep.subr.mxu0 0.0
    %723 = vmatpush1.msra.mxu0 %v90
    %724 = vmatprep.subr.mxu0 0.0
    %725 = vmatpush1.msra.mxu0 %v91
    %726 = vmatprep.subr.mxu0 0.0
    %727 = vmatpush1.msra.mxu0 %v92
    %728 = vmatprep.subr.mxu0 0.0
    %729 = vmatpush1.msra.mxu0 %v93
    %730 = vmatprep.subr.mxu0 0.0
    %731 = vmatpush1.msra.mxu0 %v94
    %732 = vmatprep.subr.mxu0 0.0
    %733 = vmatpush1.msra.mxu0 %v95
    %734 = vmatprep.subr.mxu0 0.0
    %735 = vmatpush1.msra.mxu0 %v96
    %736 = vmatprep.subr.mxu0 0.0
    %737 = vmatpush1.msra.mxu0 %v97
    %738 = vmatprep.subr.mxu0 0.0
    %739 = vmatpush1.msra.mxu0 %v98
    %740 = vmatprep.subr.mxu0 0.0
    %741 = vmatpush1.msra.mxu0 0.0
    %742 = vmatprep.subr.mxu0 0.0
    %743 = vmatpush1.msra.mxu0 0.0
    %744 = vmatprep.subr.mxu0 0.0
    %745 = vmatpush1.msra.mxu0 0.0
    %746 = vmatprep.subr.mxu0 0.0
    %747 = vmatpush1.msra.mxu0 0.0
    %748 = vmatprep.subr.mxu0 0.0
    %749 = vmatpush1.msra.mxu0 0.0
    %750 = vmatprep.subr.mxu0 0.0
    %751 = vmatpush1.msra.mxu0 0.0
    %752 = vmatprep.subr.mxu0 0.0
    %753 = vmatpush1.msra.mxu0 0.0
    %754 = vmatprep.subr.mxu0 0.0
    %755 = vmatpush1.msra.mxu0 0.0
    %756 = vmatprep.subr.mxu0 0.0
    %757 = vmatpush1.msra.mxu0 0.0
    %758 = vmatprep.subr.mxu0 0.0
    %759 = vmatpush1.msra.mxu0 0.0
    %760 = vmatprep.subr.mxu0 0.0
    %761 = vmatpush1.msra.mxu0 0.0
    %762 = vmatprep.subr.mxu0 0.0
    %763 = vmatpush1.msra.mxu0 0.0
    %764 = vmatprep.subr.mxu0 0.0
    %765 = vmatpush1.msra.mxu0 0.0
    %766 = vmatprep.subr.mxu0 0.0
    %767 = vmatpush1.msra.mxu0 0.0
    %768 = vmatprep.subr.mxu0 0.0
    %769 = vmatpush1.msra.mxu0 0.0
    %770 = vmatprep.subr.mxu0 0.0
    %771 = vmatpush1.msra.mxu0 0.0
    %772 = vmatprep.mubr.f32.mxu0 0.0
    %773 = vmatmul.mubr.f32.gmra.mrb[0].mxu0 %v703
    %v774 = vpop.f32.mrb[0].mxu0
    %v775 = vadd.f32 0.0, %v774
    %v776 = vpop.f32.mrb[0].mxu0
    %777 = vdwg.mxu0
    %v778 = vadd.f32 %v707, %v775
    %v779 = vtanh.pop %v778
    %s780 = scalar_lea.vmem [#allocation2], 64
    %781 = vst [vmem:[%s780] sm:$0xff] %v779
    %s782 = scalar_lea.vmem [#allocation3], 72
    %v783 = vld [vmem:[%s782] sm:$0xff]
    %784 = vmatprep.subr.mxu0 0.0
    %785 = vmatpush1.msra.mxu0 %v83
    %786 = vmatprep.subr.mxu0 0.0
    %787 = vmatpush1.msra.mxu0 %v84
    %788 = vmatprep.subr.mxu0 0.0
    %789 = vmatpush1.msra.mxu0 %v85
    %790 = vmatprep.subr.mxu0 0.0
    %791 = vmatpush1.msra.mxu0 %v86
    %792 = vmatprep.subr.mxu0 0.0
    %793 = vmatpush1.msra.mxu0 %v87
    %794 = vmatprep.subr.mxu0 0.0
    %795 = vmatpush1.msra.mxu0 %v88
    %796 = vmatprep.subr.mxu0 0.0
    %797 = vmatpush1.msra.mxu0 %v89
    %798 = vmatprep.subr.mxu0 0.0
    %799 = vmatpush1.msra.mxu0 %v90
    %800 = vmatprep.subr.mxu0 0.0
    %801 = vmatpush1.msra.mxu0 %v91
    %802 = vmatprep.subr.mxu0 0.0
    %803 = vmatpush1.msra.mxu0 %v92
    %804 = vmatprep.subr.mxu0 0.0
    %805 = vmatpush1.msra.mxu0 %v93
    %806 = vmatprep.subr.mxu0 0.0
    %807 = vmatpush1.msra.mxu0 %v94
    %808 = vmatprep.subr.mxu0 0.0
    %809 = vmatpush1.msra.mxu0 %v95
    %810 = vmatprep.subr.mxu0 0.0
    %811 = vmatpush1.msra.mxu0 %v96
    %812 = vmatprep.subr.mxu0 0.0
    %813 = vmatpush1.msra.mxu0 %v97
    %814 = vmatprep.subr.mxu0 0.0
    %815 = vmatpush1.msra.mxu0 %v98
    %816 = vmatprep.subr.mxu0 0.0
    %817 = vmatpush1.msra.mxu0 0.0
    %818 = vmatprep.subr.mxu0 0.0
    %819 = vmatpush1.msra.mxu0 0.0
    %820 = vmatprep.subr.mxu0 0.0
    %821 = vmatpush1.msra.mxu0 0.0
    %822 = vmatprep.subr.mxu0 0.0
    %823 = vmatpush1.msra.mxu0 0.0
    %824 = vmatprep.subr.mxu0 0.0
    %825 = vmatpush1.msra.mxu0 0.0
    %826 = vmatprep.subr.mxu0 0.0
    %827 = vmatpush1.msra.mxu0 0.0
    %828 = vmatprep.subr.mxu0 0.0
    %829 = vmatpush1.msra.mxu0 0.0
    %830 = vmatprep.subr.mxu0 0.0
    %831 = vmatpush1.msra.mxu0 0.0
    %832 = vmatprep.subr.mxu0 0.0
    %833 = vmatpush1.msra.mxu0 0.0
    %834 = vmatprep.subr.mxu0 0.0
    %835 = vmatpush1.msra.mxu0 0.0
    %836 = vmatprep.subr.mxu0 0.0
    %837 = vmatpush1.msra.mxu0 0.0
    %838 = vmatprep.subr.mxu0 0.0
    %839 = vmatpush1.msra.mxu0 0.0
    %840 = vmatprep.subr.mxu0 0.0
    %841 = vmatpush1.msra.mxu0 0.0
    %842 = vmatprep.subr.mxu0 0.0
    %843 = vmatpush1.msra.mxu0 0.0
    %844 = vmatprep.subr.mxu0 0.0
    %845 = vmatpush1.msra.mxu0 0.0
    %846 = vmatprep.subr.mxu0 0.0
    %847 = vmatpush1.msra.mxu0 0.0
    %848 = vmatprep.mubr.f32.mxu0 0.0
    %849 = vmatmul.mubr.f32.gmra.mrb[0].mxu0 %v779
    %v850 = vpop.f32.mrb[0].mxu0
    %v851 = vadd.f32 0.0, %v850
    %v852 = vpop.f32.mrb[0].mxu0
    %853 = vdwg.mxu0
    %v854 = vadd.f32 %v783, %v851
    %v855 = vtanh.pop %v854
    %s856 = scalar_lea.vmem [#allocation2], 72
    %857 = vst [vmem:[%s856] sm:$0xff] %v855
    %s858 = scalar_lea.vmem [#allocation3], 80
    %v859 = vld [vmem:[%s858] sm:$0xff]
    %860 = vmatprep.subr.mxu0 0.0
    %861 = vmatpush1.msra.mxu0 %v83
    %862 = vmatprep.subr.mxu0 0.0
    %863 = vmatpush1.msra.mxu0 %v84
    %864 = vmatprep.subr.mxu0 0.0
    %865 = vmatpush1.msra.mxu0 %v85
    %866 = vmatprep.subr.mxu0 0.0
    %867 = vmatpush1.msra.mxu0 %v86
    %868 = vmatprep.subr.mxu0 0.0
    %869 = vmatpush1.msra.mxu0 %v87
    %870 = vmatprep.subr.mxu0 0.0
    %871 = vmatpush1.msra.mxu0 %v88
    %872 = vmatprep.subr.mxu0 0.0
    %873 = vmatpush1.msra.mxu0 %v89
    %874 = vmatprep.subr.mxu0 0.0
    %875 = vmatpush1.msra.mxu0 %v90
    %876 = vmatprep.subr.mxu0 0.0
    %877 = vmatpush1.msra.mxu0 %v91
    %878 = vmatprep.subr.mxu0 0.0
    %879 = vmatpush1.msra.mxu0 %v92
    %880 = vmatprep.subr.mxu0 0.0
    %881 = vmatpush1.msra.mxu0 %v93
    %882 = vmatprep.subr.mxu0 0.0
    %883 = vmatpush1.msra.mxu0 %v94
    %884 = vmatprep.subr.mxu0 0.0
    %885 = vmatpush1.msra.mxu0 %v95
    %886 = vmatprep.subr.mxu0 0.0
    %887 = vmatpush1.msra.mxu0 %v96
    %888 = vmatprep.subr.mxu0 0.0
    %889 = vmatpush1.msra.mxu0 %v97
    %890 = vmatprep.subr.mxu0 0.0
    %891 = vmatpush1.msra.mxu0 %v98
    %892 = vmatprep.subr.mxu0 0.0
    %893 = vmatpush1.msra.mxu0 0.0
    %894 = vmatprep.subr.mxu0 0.0
    %895 = vmatpush1.msra.mxu0 0.0
    %896 = vmatprep.subr.mxu0 0.0
    %897 = vmatpush1.msra.mxu0 0.0
    %898 = vmatprep.subr.mxu0 0.0
    %899 = vmatpush1.msra.mxu0 0.0
    %900 = vmatprep.subr.mxu0 0.0
    %901 = vmatpush1.msra.mxu0 0.0
    %902 = vmatprep.subr.mxu0 0.0
    %903 = vmatpush1.msra.mxu0 0.0
    %904 = vmatprep.subr.mxu0 0.0
    %905 = vmatpush1.msra.mxu0 0.0
    %906 = vmatprep.subr.mxu0 0.0
    %907 = vmatpush1.msra.mxu0 0.0
    %908 = vmatprep.subr.mxu0 0.0
    %909 = vmatpush1.msra.mxu0 0.0
    %910 = vmatprep.subr.mxu0 0.0
    %911 = vmatpush1.msra.mxu0 0.0
    %912 = vmatprep.subr.mxu0 0.0
    %913 = vmatpush1.msra.mxu0 0.0
    %914 = vmatprep.subr.mxu0 0.0
    %915 = vmatpush1.msra.mxu0 0.0
    %916 = vmatprep.subr.mxu0 0.0
    %917 = vmatpush1.msra.mxu0 0.0
    %918 = vmatprep.subr.mxu0 0.0
    %919 = vmatpush1.msra.mxu0 0.0
    %920 = vmatprep.subr.mxu0 0.0
    %921 = vmatpush1.msra.mxu0 0.0
    %922 = vmatprep.subr.mxu0 0.0
    %923 = vmatpush1.msra.mxu0 0.0
    %924 = vmatprep.mubr.f32.mxu0 0.0
    %925 = vmatmul.mubr.f32.gmra.mrb[0].mxu0 %v855
    %v926 = vpop.f32.mrb[0].mxu0
    %v927 = vadd.f32 0.0, %v926
    %v928 = vpop.f32.mrb[0].mxu0
    %929 = vdwg.mxu0
    %v930 = vadd.f32 %v859, %v927
    %v931 = vtanh.pop %v930
    %s932 = scalar_lea.vmem [#allocation2], 80
    %933 = vst [vmem:[%s932] sm:$0xff] %v931
    %s934 = scalar_lea.vmem [#allocation3], 88
    %v935 = vld [vmem:[%s934] sm:$0xff]
    %936 = vmatprep.subr.mxu0 0.0
    %937 = vmatpush1.msra.mxu0 %v83
    %938 = vmatprep.subr.mxu0 0.0
    %939 = vmatpush1.msra.mxu0 %v84
    %940 = vmatprep.subr.mxu0 0.0
    %941 = vmatpush1.msra.mxu0 %v85
    %942 = vmatprep.subr.mxu0 0.0
    %943 = vmatpush1.msra.mxu0 %v86
    %944 = vmatprep.subr.mxu0 0.0
    %945 = vmatpush1.msra.mxu0 %v87
    %946 = vmatprep.subr.mxu0 0.0
    %947 = vmatpush1.msra.mxu0 %v88
    %948 = vmatprep.subr.mxu0 0.0
    %949 = vmatpush1.msra.mxu0 %v89
    %950 = vmatprep.subr.mxu0 0.0
    %951 = vmatpush1.msra.mxu0 %v90
    %952 = vmatprep.subr.mxu0 0.0
    %953 = vmatpush1.msra.mxu0 %v91
    %954 = vmatprep.subr.mxu0 0.0
    %955 = vmatpush1.msra.mxu0 %v92
    %956 = vmatprep.subr.mxu0 0.0
    %957 = vmatpush1.msra.mxu0 %v93
    %958 = vmatprep.subr.mxu0 0.0
    %959 = vmatpush1.msra.mxu0 %v94
    %960 = vmatprep.subr.mxu0 0.0
    %961 = vmatpush1.msra.mxu0 %v95
    %962 = vmatprep.subr.mxu0 0.0
    %963 = vmatpush1.msra.mxu0 %v96
    %964 = vmatprep.subr.mxu0 0.0
    %965 = vmatpush1.msra.mxu0 %v97
    %966 = vmatprep.subr.mxu0 0.0
    %967 = vmatpush1.msra.mxu0 %v98
    %968 = vmatprep.subr.mxu0 0.0
    %969 = vmatpush1.msra.mxu0 0.0
    %970 = vmatprep.subr.mxu0 0.0
    %971 = vmatpush1.msra.mxu0 0.0
    %972 = vmatprep.subr.mxu0 0.0
    %973 = vmatpush1.msra.mxu0 0.0
    %974 = vmatprep.subr.mxu0 0.0
    %975 = vmatpush1.msra.mxu0 0.0
    %976 = vmatprep.subr.mxu0 0.0
    %977 = vmatpush1.msra.mxu0 0.0
    %978 = vmatprep.subr.mxu0 0.0
    %979 = vmatpush1.msra.mxu0 0.0
    %980 = vmatprep.subr.mxu0 0.0
    %981 = vmatpush1.msra.mxu0 0.0
    %982 = vmatprep.subr.mxu0 0.0
    %983 = vmatpush1.msra.mxu0 0.0
    %984 = vmatprep.subr.mxu0 0.0
    %985 = vmatpush1.msra.mxu0 0.0
    %986 = vmatprep.subr.mxu0 0.0
    %987 = vmatpush1.msra.mxu0 0.0
    %988 = vmatprep.subr.mxu0 0.0
    %989 = vmatpush1.msra.mxu0 0.0
    %990 = vmatprep.subr.mxu0 0.0
    %991 = vmatpush1.msra.mxu0 0.0
    %992 = vmatprep.subr.mxu0 0.0
    %993 = vmatpush1.msra.mxu0 0.0
    %994 = vmatprep.subr.mxu0 0.0
    %995 = vmatpush1.msra.mxu0 0.0
    %996 = vmatprep.subr.mxu0 0.0
    %997 = vmatpush1.msra.mxu0 0.0
    %998 = vmatprep.subr.mxu0 0.0
    %999 = vmatpush1.msra.mxu0 0.0
    %1000 = vmatprep.mubr.f32.mxu0 0.0
    %1001 = vmatmul.mubr.f32.gmra.mrb[0].mxu0 %v931
    %v1002 = vpop.f32.mrb[0].mxu0
    %v1003 = vadd.f32 0.0, %v1002
    %v1004 = vpop.f32.mrb[0].mxu0
    %1005 = vdwg.mxu0
    %v1006 = vadd.f32 %v935, %v1003
    %v1007 = vtanh.pop %v1006
    %s1008 = scalar_lea.vmem [#allocation2], 88
    %1009 = vst [vmem:[%s1008] sm:$0xff] %v1007
    %s1010 = scalar_lea.vmem [#allocation3], 96
    %v1011 = vld [vmem:[%s1010] sm:$0xff]
    %1012 = vmatprep.subr.mxu0 0.0
    %1013 = vmatpush1.msra.mxu0 %v83
    %1014 = vmatprep.subr.mxu0 0.0
    %1015 = vmatpush1.msra.mxu0 %v84
    %1016 = vmatprep.subr.mxu0 0.0
    %1017 = vmatpush1.msra.mxu0 %v85
    %1018 = vmatprep.subr.mxu0 0.0
    %1019 = vmatpush1.msra.mxu0 %v86
    %1020 = vmatprep.subr.mxu0 0.0
    %1021 = vmatpush1.msra.mxu0 %v87
    %1022 = vmatprep.subr.mxu0 0.0
    %1023 = vmatpush1.msra.mxu0 %v88
    %1024 = vmatprep.subr.mxu0 0.0
    %1025 = vmatpush1.msra.mxu0 %v89
    %1026 = vmatprep.subr.mxu0 0.0
    %1027 = vmatpush1.msra.mxu0 %v90
    %1028 = vmatprep.subr.mxu0 0.0
    %1029 = vmatpush1.msra.mxu0 %v91
    %1030 = vmatprep.subr.mxu0 0.0
    %1031 = vmatpush1.msra.mxu0 %v92
    %1032 = vmatprep.subr.mxu0 0.0
    %1033 = vmatpush1.msra.mxu0 %v93
    %1034 = vmatprep.subr.mxu0 0.0
    %1035 = vmatpush1.msra.mxu0 %v94
    %1036 = vmatprep.subr.mxu0 0.0
    %1037 = vmatpush1.msra.mxu0 %v95
    %1038 = vmatprep.subr.mxu0 0.0
    %1039 = vmatpush1.msra.mxu0 %v96
    %1040 = vmatprep.subr.mxu0 0.0
    %1041 = vmatpush1.msra.mxu0 %v97
    %1042 = vmatprep.subr.mxu0 0.0
    %1043 = vmatpush1.msra.mxu0 %v98
    %1044 = vmatprep.subr.mxu0 0.0
    %1045 = vmatpush1.msra.mxu0 0.0
    %1046 = vmatprep.subr.mxu0 0.0
    %1047 = vmatpush1.msra.mxu0 0.0
    %1048 = vmatprep.subr.mxu0 0.0
    %1049 = vmatpush1.msra.mxu0 0.0
    %1050 = vmatprep.subr.mxu0 0.0
    %1051 = vmatpush1.msra.mxu0 0.0
    %1052 = vmatprep.subr.mxu0 0.0
    %1053 = vmatpush1.msra.mxu0 0.0
    %1054 = vmatprep.subr.mxu0 0.0
    %1055 = vmatpush1.msra.mxu0 0.0
    %1056 = vmatprep.subr.mxu0 0.0
    %1057 = vmatpush1.msra.mxu0 0.0
    %1058 = vmatprep.subr.mxu0 0.0
    %1059 = vmatpush1.msra.mxu0 0.0
    %1060 = vmatprep.subr.mxu0 0.0
    %1061 = vmatpush1.msra.mxu0 0.0
    %1062 = vmatprep.subr.mxu0 0.0
    %1063 = vmatpush1.msra.mxu0 0.0
    %1064 = vmatprep.subr.mxu0 0.0
    %1065 = vmatpush1.msra.mxu0 0.0
    %1066 = vmatprep.subr.mxu0 0.0
    %1067 = vmatpush1.msra.mxu0 0.0
    %1068 = vmatprep.subr.mxu0 0.0
    %1069 = vmatpush1.msra.mxu0 0.0
    %1070 = vmatprep.subr.mxu0 0.0
    %1071 = vmatpush1.msra.mxu0 0.0
    %1072 = vmatprep.subr.mxu0 0.0
    %1073 = vmatpush1.msra.mxu0 0.0
    %1074 = vmatprep.subr.mxu0 0.0
    %1075 = vmatpush1.msra.mxu0 0.0
    %1076 = vmatprep.mubr.f32.mxu0 0.0
    %1077 = vmatmul.mubr.f32.gmra.mrb[0].mxu0 %v1007
    %v1078 = vpop.f32.mrb[0].mxu0
    %v1079 = vadd.f32 0.0, %v1078
    %v1080 = vpop.f32.mrb[0].mxu0
    %1081 = vdwg.mxu0
    %v1082 = vadd.f32 %v1011, %v1079
    %v1083 = vtanh.pop %v1082
    %s1084 = scalar_lea.vmem [#allocation2], 96
    %1085 = vst [vmem:[%s1084] sm:$0xff] %v1083
    %s1086 = scalar_lea.vmem [#allocation3], 104
    %v1087 = vld [vmem:[%s1086] sm:$0xff]
    %1088 = vmatprep.subr.mxu0 0.0
    %1089 = vmatpush1.msra.mxu0 %v83
    %1090 = vmatprep.subr.mxu0 0.0
    %1091 = vmatpush1.msra.mxu0 %v84
    %1092 = vmatprep.subr.mxu0 0.0
    %1093 = vmatpush1.msra.mxu0 %v85
    %1094 = vmatprep.subr.mxu0 0.0
    %1095 = vmatpush1.msra.mxu0 %v86
    %1096 = vmatprep.subr.mxu0 0.0
    %1097 = vmatpush1.msra.mxu0 %v87
    %1098 = vmatprep.subr.mxu0 0.0
    %1099 = vmatpush1.msra.mxu0 %v88
    %1100 = vmatprep.subr.mxu0 0.0
    %1101 = vmatpush1.msra.mxu0 %v89
    %1102 = vmatprep.subr.mxu0 0.0
    %1103 = vmatpush1.msra.mxu0 %v90
    %1104 = vmatprep.subr.mxu0 0.0
    %1105 = vmatpush1.msra.mxu0 %v91
    %1106 = vmatprep.subr.mxu0 0.0
    %1107 = vmatpush1.msra.mxu0 %v92
    %1108 = vmatprep.subr.mxu0 0.0
    %1109 = vmatpush1.msra.mxu0 %v93
    %1110 = vmatprep.subr.mxu0 0.0
    %1111 = vmatpush1.msra.mxu0 %v94
    %1112 = vmatprep.subr.mxu0 0.0
    %1113 = vmatpush1.msra.mxu0 %v95
    %1114 = vmatprep.subr.mxu0 0.0
    %1115 = vmatpush1.msra.mxu0 %v96
    %1116 = vmatprep.subr.mxu0 0.0
    %1117 = vmatpush1.msra.mxu0 %v97
    %1118 = vmatprep.subr.mxu0 0.0
    %1119 = vmatpush1.msra.mxu0 %v98
    %1120 = vmatprep.subr.mxu0 0.0
    %1121 = vmatpush1.msra.mxu0 0.0
    %1122 = vmatprep.subr.mxu0 0.0
    %1123 = vmatpush1.msra.mxu0 0.0
    %1124 = vmatprep.subr.mxu0 0.0
    %1125 = vmatpush1.msra.mxu0 0.0
    %1126 = vmatprep.subr.mxu0 0.0
    %1127 = vmatpush1.msra.mxu0 0.0
    %1128 = vmatprep.subr.mxu0 0.0
    %1129 = vmatpush1.msra.mxu0 0.0
    %1130 = vmatprep.subr.mxu0 0.0
    %1131 = vmatpush1.msra.mxu0 0.0
    %1132 = vmatprep.subr.mxu0 0.0
    %1133 = vmatpush1.msra.mxu0 0.0
    %1134 = vmatprep.subr.mxu0 0.0
    %1135 = vmatpush1.msra.mxu0 0.0
    %1136 = vmatprep.subr.mxu0 0.0
    %1137 = vmatpush1.msra.mxu0 0.0
    %1138 = vmatprep.subr.mxu0 0.0
    %1139 = vmatpush1.msra.mxu0 0.0
    %1140 = vmatprep.subr.mxu0 0.0
    %1141 = vmatpush1.msra.mxu0 0.0
    %1142 = vmatprep.subr.mxu0 0.0
    %1143 = vmatpush1.msra.mxu0 0.0
    %1144 = vmatprep.subr.mxu0 0.0
    %1145 = vmatpush1.msra.mxu0 0.0
    %1146 = vmatprep.subr.mxu0 0.0
    %1147 = vmatpush1.msra.mxu0 0.0
    %1148 = vmatprep.subr.mxu0 0.0
    %1149 = vmatpush1.msra.mxu0 0.0
    %1150 = vmatprep.subr.mxu0 0.0
    %1151 = vmatpush1.msra.mxu0 0.0
    %1152 = vmatprep.mubr.f32.mxu0 0.0
    %1153 = vmatmul.mubr.f32.gmra.mrb[0].mxu0 %v1083
    %v1154 = vpop.f32.mrb[0].mxu0
    %v1155 = vadd.f32 0.0, %v1154
    %v1156 = vpop.f32.mrb[0].mxu0
    %1157 = vdwg.mxu0
    %v1158 = vadd.f32 %v1087, %v1155
    %v1159 = vtanh.pop %v1158
    %s1160 = scalar_lea.vmem [#allocation2], 104
    %1161 = vst [vmem:[%s1160] sm:$0xff] %v1159
    %s1162 = scalar_lea.vmem [#allocation3], 112
    %v1163 = vld [vmem:[%s1162] sm:$0xff]
    %1164 = vmatprep.subr.mxu0 0.0
    %1165 = vmatpush1.msra.mxu0 %v83
    %1166 = vmatprep.subr.mxu0 0.0
    %1167 = vmatpush1.msra.mxu0 %v84
    %1168 = vmatprep.subr.mxu0 0.0
    %1169 = vmatpush1.msra.mxu0 %v85
    %1170 = vmatprep.subr.mxu0 0.0
    %1171 = vmatpush1.msra.mxu0 %v86
    %1172 = vmatprep.subr.mxu0 0.0
    %1173 = vmatpush1.msra.mxu0 %v87
    %1174 = vmatprep.subr.mxu0 0.0
    %1175 = vmatpush1.msra.mxu0 %v88
    %1176 = vmatprep.subr.mxu0 0.0
    %1177 = vmatpush1.msra.mxu0 %v89
    %1178 = vmatprep.subr.mxu0 0.0
    %1179 = vmatpush1.msra.mxu0 %v90
    %1180 = vmatprep.subr.mxu0 0.0
    %1181 = vmatpush1.msra.mxu0 %v91
    %1182 = vmatprep.subr.mxu0 0.0
    %1183 = vmatpush1.msra.mxu0 %v92
    %1184 = vmatprep.subr.mxu0 0.0
    %1185 = vmatpush1.msra.mxu0 %v93
    %1186 = vmatprep.subr.mxu0 0.0
    %1187 = vmatpush1.msra.mxu0 %v94
    %1188 = vmatprep.subr.mxu0 0.0
    %1189 = vmatpush1.msra.mxu0 %v95
    %1190 = vmatprep.subr.mxu0 0.0
    %1191 = vmatpush1.msra.mxu0 %v96
    %1192 = vmatprep.subr.mxu0 0.0
    %1193 = vmatpush1.msra.mxu0 %v97
    %1194 = vmatprep.subr.mxu0 0.0
    %1195 = vmatpush1.msra.mxu0 %v98
    %1196 = vmatprep.subr.mxu0 0.0
    %1197 = vmatpush1.msra.mxu0 0.0
    %1198 = vmatprep.subr.mxu0 0.0
    %1199 = vmatpush1.msra.mxu0 0.0
    %1200 = vmatprep.subr.mxu0 0.0
    %1201 = vmatpush1.msra.mxu0 0.0
    %1202 = vmatprep.subr.mxu0 0.0
    %1203 = vmatpush1.msra.mxu0 0.0
    %1204 = vmatprep.subr.mxu0 0.0
    %1205 = vmatpush1.msra.mxu0 0.0
    %1206 = vmatprep.subr.mxu0 0.0
    %1207 = vmatpush1.msra.mxu0 0.0
    %1208 = vmatprep.subr.mxu0 0.0
    %1209 = vmatpush1.msra.mxu0 0.0
    %1210 = vmatprep.subr.mxu0 0.0
    %1211 = vmatpush1.msra.mxu0 0.0
    %1212 = vmatprep.subr.mxu0 0.0
    %1213 = vmatpush1.msra.mxu0 0.0
    %1214 = vmatprep.subr.mxu0 0.0
    %1215 = vmatpush1.msra.mxu0 0.0
    %1216 = vmatprep.subr.mxu0 0.0
    %1217 = vmatpush1.msra.mxu0 0.0
    %1218 = vmatprep.subr.mxu0 0.0
    %1219 = vmatpush1.msra.mxu0 0.0
    %1220 = vmatprep.subr.mxu0 0.0
    %1221 = vmatpush1.msra.mxu0 0.0
    %1222 = vmatprep.subr.mxu0 0.0
    %1223 = vmatpush1.msra.mxu0 0.0
    %1224 = vmatprep.subr.mxu0 0.0
    %1225 = vmatpush1.msra.mxu0 0.0
    %1226 = vmatprep.subr.mxu0 0.0
    %1227 = vmatpush1.msra.mxu0 0.0
    %1228 = vmatprep.mubr.f32.mxu0 0.0
    %1229 = vmatmul.mubr.f32.gmra.mrb[0].mxu0 %v1159
    %v1230 = vpop.f32.mrb[0].mxu0
    %v1231 = vadd.f32 0.0, %v1230
    %v1232 = vpop.f32.mrb[0].mxu0
    %1233 = vdwg.mxu0
    %v1234 = vadd.f32 %v1163, %v1231
    %v1235 = vtanh.pop %v1234
    %s1236 = scalar_lea.vmem [#allocation2], 112
    %1237 = vst [vmem:[%s1236] sm:$0xff] %v1235
    %s1238 = scalar_lea.vmem [#allocation3], 120
    %v1239 = vld [vmem:[%s1238] sm:$0xff]
    %1240 = vmatprep.subr.mxu0 0.0
    %1241 = vmatpush1.msra.mxu0 %v83
    %1242 = vmatprep.subr.mxu0 0.0
    %1243 = vmatpush1.msra.mxu0 %v84
    %1244 = vmatprep.subr.mxu0 0.0
    %1245 = vmatpush1.msra.mxu0 %v85
    %1246 = vmatprep.subr.mxu0 0.0
    %1247 = vmatpush1.msra.mxu0 %v86
    %1248 = vmatprep.subr.mxu0 0.0
    %1249 = vmatpush1.msra.mxu0 %v87
    %1250 = vmatprep.subr.mxu0 0.0
    %1251 = vmatpush1.msra.mxu0 %v88
    %1252 = vmatprep.subr.mxu0 0.0
    %1253 = vmatpush1.msra.mxu0 %v89
    %1254 = vmatprep.subr.mxu0 0.0
    %1255 = vmatpush1.msra.mxu0 %v90
    %1256 = vmatprep.subr.mxu0 0.0
    %1257 = vmatpush1.msra.mxu0 %v91
    %1258 = vmatprep.subr.mxu0 0.0
    %1259 = vmatpush1.msra.mxu0 %v92
    %1260 = vmatprep.subr.mxu0 0.0
    %1261 = vmatpush1.msra.mxu0 %v93
    %1262 = vmatprep.subr.mxu0 0.0
    %1263 = vmatpush1.msra.mxu0 %v94
    %1264 = vmatprep.subr.mxu0 0.0
    %1265 = vmatpush1.msra.mxu0 %v95
    %1266 = vmatprep.subr.mxu0 0.0
    %1267 = vmatpush1.msra.mxu0 %v96
    %1268 = vmatprep.subr.mxu0 0.0
    %1269 = vmatpush1.msra.mxu0 %v97
    %1270 = vmatprep.subr.mxu0 0.0
    %1271 = vmatpush1.msra.mxu0 %v98
    %1272 = vmatprep.subr.mxu0 0.0
    %1273 = vmatpush1.msra.mxu0 0.0
    %1274 = vmatprep.subr.mxu0 0.0
    %1275 = vmatpush1.msra.mxu0 0.0
    %1276 = vmatprep.subr.mxu0 0.0
    %1277 = vmatpush1.msra.mxu0 0.0
    %1278 = vmatprep.subr.mxu0 0.0
    %1279 = vmatpush1.msra.mxu0 0.0
    %1280 = vmatprep.subr.mxu0 0.0
    %1281 = vmatpush1.msra.mxu0 0.0
    %1282 = vmatprep.subr.mxu0 0.0
    %1283 = vmatpush1.msra.mxu0 0.0
    %1284 = vmatprep.subr.mxu0 0.0
    %1285 = vmatpush1.msra.mxu0 0.0
    %1286 = vmatprep.subr.mxu0 0.0
    %1287 = vmatpush1.msra.mxu0 0.0
    %1288 = vmatprep.subr.mxu0 0.0
    %1289 = vmatpush1.msra.mxu0 0.0
    %1290 = vmatprep.subr.mxu0 0.0
    %1291 = vmatpush1.msra.mxu0 0.0
    %1292 = vmatprep.subr.mxu0 0.0
    %1293 = vmatpush1.msra.mxu0 0.0
    %1294 = vmatprep.subr.mxu0 0.0
    %1295 = vmatpush1.msra.mxu0 0.0
    %1296 = vmatprep.subr.mxu0 0.0
    %1297 = vmatpush1.msra.mxu0 0.0
    %1298 = vmatprep.subr.mxu0 0.0
    %1299 = vmatpush1.msra.mxu0 0.0
    %1300 = vmatprep.subr.mxu0 0.0
    %1301 = vmatpush1.msra.mxu0 0.0
    %1302 = vmatprep.subr.mxu0 0.0
    %1303 = vmatpush1.msra.mxu0 0.0
    %1304 = vmatprep.mubr.f32.mxu0 0.0
    %1305 = vmatmul.mubr.f32.gmra.mrb[0].mxu0 %v1235
    %v1306 = vpop.f32.mrb[0].mxu0
    %v1307 = vadd.f32 0.0, %v1306
    %v1308 = vpop.f32.mrb[0].mxu0
    %1309 = vdwg.mxu0
    %v1310 = vadd.f32 %v1239, %v1307
    %v1311 = vtanh.pop %v1310
    %s1312 = scalar_lea.vmem [#allocation2], 120
    %1313 = vst [vmem:[%s1312] sm:$0xff] %v1311
    %1314 = vst [vmem:[#allocation12] sm:$0xff] %v1311
    %v1315 = vld [vmem:[#allocation2] sm:$0xff]
    %v1316 = vld [vmem:[#allocation2 + $0x8] sm:$0xff]
    %v1317 = vld [vmem:[#allocation2 + $0x10] sm:$0xff]
    %v1318 = vld [vmem:[#allocation2 + $0x18] sm:$0xff]
    %v1319 = vld [vmem:[#allocation2 + $0x20] sm:$0xff]
    %v1320 = vld [vmem:[#allocation2 + $0x28] sm:$0xff]
    %v1321 = vld [vmem:[#allocation2 + $0x30] sm:$0xff]
    %v1322 = vld [vmem:[#allocation2 + $0x38] sm:$0xff]
    %v1323 = vld [vmem:[#allocation2 + $0x40] sm:$0xff]
    %v1324 = vld [vmem:[#allocation2 + $0x48] sm:$0xff]
    %v1325 = vld [vmem:[#allocation2 + $0x50] sm:$0xff]
    %v1326 = vld [vmem:[#allocation2 + $0x58] sm:$0xff]
    %v1327 = vld [vmem:[#allocation2 + $0x60] sm:$0xff]
    %v1328 = vld [vmem:[#allocation2 + $0x68] sm:$0xff]
    %v1329 = vld [vmem:[#allocation2 + $0x70] sm:$0xff]
    %v1330 = vld [vmem:[#allocation2 + $0x78] sm:$0xff]
    %v1331 = vld [vmem:[#allocation9] sm:$0xff]
    %v1332 = vld [vmem:[#allocation9 + $0x8] sm:$0xff]
    %v1333 = vld [vmem:[#allocation9 + $0x10] sm:$0xff]
    %v1334 = vld [vmem:[#allocation9 + $0x18] sm:$0xff]
    %v1335 = vld [vmem:[#allocation9 + $0x20] sm:$0xff]
    %v1336 = vld [vmem:[#allocation9 + $0x28] sm:$0xff]
    %v1337 = vld [vmem:[#allocation9 + $0x30] sm:$0xff]
    %v1338 = vld [vmem:[#allocation9 + $0x38] sm:$0xff]
    %v1339 = vld [vmem:[#allocation9 + $0x40] sm:$0xff]
    %v1340 = vld [vmem:[#allocation9 + $0x48] sm:$0xff]
    %v1341 = vld [vmem:[#allocation9 + $0x50] sm:$0xff]
    %v1342 = vld [vmem:[#allocation9 + $0x58] sm:$0xff]
    %v1343 = vld [vmem:[#allocation9 + $0x60] sm:$0xff]
    %v1344 = vld [vmem:[#allocation9 + $0x68] sm:$0xff]
    %v1345 = vld [vmem:[#allocation9 + $0x70] sm:$0xff]
    %v1346 = vld [vmem:[#allocation9 + $0x78] sm:$0xff]
    %v1347 = vld [vmem:[%s4] sm:$0x1]
    %v1349 = vlaneseq
    %v1350 = vshrl.u32 %v1349, 7
    %v1351 = vsub.s32 0, %v1350
    %v1352 = vrot.slane %v1347, %v1351
    %1354 = vmatprep.subr.mxu0 0.0
    %1355 = vmatpush1.msra.mxu0 %v1331
    %1356 = vmatprep.subr.mxu0 0.0
    %1357 = vmatpush1.msra.mxu0 %v1332
    %1358 = vmatprep.subr.mxu0 0.0
    %1359 = vmatpush1.msra.mxu0 %v1333
    %1360 = vmatprep.subr.mxu0 0.0
    %1361 = vmatpush1.msra.mxu0 %v1334
    %1362 = vmatprep.subr.mxu0 0.0
    %1363 = vmatpush1.msra.mxu0 %v1335
    %1364 = vmatprep.subr.mxu0 0.0
    %1365 = vmatpush1.msra.mxu0 %v1336
    %1366 = vmatprep.subr.mxu0 0.0
    %1367 = vmatpush1.msra.mxu0 %v1337
    %1368 = vmatprep.subr.mxu0 0.0
    %1369 = vmatpush1.msra.mxu0 %v1338
    %1370 = vmatprep.subr.mxu0 0.0
    %1371 = vmatpush1.msra.mxu0 %v1339
    %1372 = vmatprep.subr.mxu0 0.0
    %1373 = vmatpush1.msra.mxu0 %v1340
    %1374 = vmatprep.subr.mxu0 0.0
    %1375 = vmatpush1.msra.mxu0 %v1341
    %1376 = vmatprep.subr.mxu0 0.0
    %1377 = vmatpush1.msra.mxu0 %v1342
    %1378 = vmatprep.subr.mxu0 0.0
    %1379 = vmatpush1.msra.mxu0 %v1343
    %1380 = vmatprep.subr.mxu0 0.0
    %1381 = vmatpush1.msra.mxu0 %v1344
    %1382 = vmatprep.subr.mxu0 0.0
    %1383 = vmatpush1.msra.mxu0 %v1345
    %1384 = vmatprep.subr.mxu0 0.0
    %1385 = vmatpush1.msra.mxu0 %v1346
    %1386 = vmatprep.subr.mxu0 0.0
    %1387 = vmatpush1.msra.mxu0 0.0
    %1388 = vmatprep.subr.mxu0 0.0
    %1389 = vmatpush1.msra.mxu0 0.0
    %1390 = vmatprep.subr.mxu0 0.0
    %1391 = vmatpush1.msra.mxu0 0.0
    %1392 = vmatprep.subr.mxu0 0.0
    %1393 = vmatpush1.msra.mxu0 0.0
    %1394 = vmatprep.subr.mxu0 0.0
    %1395 = vmatpush1.msra.mxu0 0.0
    %1396 = vmatprep.subr.mxu0 0.0
    %1397 = vmatpush1.msra.mxu0 0.0
    %1398 = vmatprep.subr.mxu0 0.0
    %1399 = vmatpush1.msra.mxu0 0.0
    %1400 = vmatprep.subr.mxu0 0.0
    %1401 = vmatpush1.msra.mxu0 0.0
    %1402 = vmatprep.subr.mxu0 0.0
    %1403 = vmatpush1.msra.mxu0 0.0
    %1404 = vmatprep.subr.mxu0 0.0
    %1405 = vmatpush1.msra.mxu0 0.0
    %1406 = vmatprep.subr.mxu0 0.0
    %1407 = vmatpush1.msra.mxu0 0.0
    %1408 = vmatprep.subr.mxu0 0.0
    %1409 = vmatpush1.msra.mxu0 0.0
    %1410 = vmatprep.subr.mxu0 0.0
    %1411 = vmatpush1.msra.mxu0 0.0
    %1412 = vmatprep.subr.mxu0 0.0
    %1413 = vmatpush1.msra.mxu0 0.0
    %1414 = vmatprep.subr.mxu0 0.0
    %1415 = vmatpush1.msra.mxu0 0.0
    %1416 = vmatprep.subr.mxu0 0.0
    %1417 = vmatpush1.msra.mxu0 0.0
    %1418 = vmatprep.mubr.f32.mxu0 0.0
    %1419 = vmatmul.mubr.f32.gmra.mrb[0].mxu0 %v1315
    %v1420 = vpop.f32.mrb[0].mxu0
    %v1421 = vadd.f32 %v1352, %v1420
    %v1422 = vpop.f32.mrb[0].mxu0
    %1423 = vmatprep.mubr.f32.mxu0 0.0
    %1424 = vmatmul.mubr.f32.gmra.mrb[0].mxu0 %v1316
    %v1425 = vpop.f32.mrb[0].mxu0
    %v1426 = vadd.f32 %v1352, %v1425
    %v1427 = vpop.f32.mrb[0].mxu0
    %1428 = vmatprep.mubr.f32.mxu0 0.0
    %1429 = vmatmul.mubr.f32.gmra.mrb[0].mxu0 %v1317
    %v1430 = vpop.f32.mrb[0].mxu0
    %v1431 = vadd.f32 %v1352, %v1430
    %v1432 = vpop.f32.mrb[0].mxu0
    %1433 = vmatprep.mubr.f32.mxu0 0.0
    %1434 = vmatmul.mubr.f32.gmra.mrb[0].mxu0 %v1318
    %v1435 = vpop.f32.mrb[0].mxu0
    %v1436 = vadd.f32 %v1352, %v1435
    %v1437 = vpop.f32.mrb[0].mxu0
    %1438 = vmatprep.mubr.f32.mxu0 0.0
    %1439 = vmatmul.mubr.f32.gmra.mrb[0].mxu0 %v1319
    %v1440 = vpop.f32.mrb[0].mxu0
    %v1441 = vadd.f32 %v1352, %v1440
    %v1442 = vpop.f32.mrb[0].mxu0
    %1443 = vmatprep.mubr.f32.mxu0 0.0
    %1444 = vmatmul.mubr.f32.gmra.mrb[0].mxu0 %v1320
    %v1445 = vpop.f32.mrb[0].mxu0
    %v1446 = vadd.f32 %v1352, %v1445
    %v1447 = vpop.f32.mrb[0].mxu0
    %1448 = vmatprep.mubr.f32.mxu0 0.0
    %1449 = vmatmul.mubr.f32.gmra.mrb[0].mxu0 %v1321
    %v1450 = vpop.f32.mrb[0].mxu0
    %v1451 = vadd.f32 %v1352, %v1450
    %v1452 = vpop.f32.mrb[0].mxu0
    %1453 = vmatprep.mubr.f32.mxu0 0.0
    %1454 = vmatmul.mubr.f32.gmra.mrb[0].mxu0 %v1322
    %v1455 = vpop.f32.mrb[0].mxu0
    %v1456 = vadd.f32 %v1352, %v1455
    %v1457 = vpop.f32.mrb[0].mxu0
    %1458 = vmatprep.mubr.f32.mxu0 0.0
    %1459 = vmatmul.mubr.f32.gmra.mrb[0].mxu0 %v1323
    %v1460 = vpop.f32.mrb[0].mxu0
    %v1461 = vadd.f32 %v1352, %v1460
    %v1462 = vpop.f32.mrb[0].mxu0
    %1463 = vmatprep.mubr.f32.mxu0 0.0
    %1464 = vmatmul.mubr.f32.gmra.mrb[0].mxu0 %v1324
    %v1465 = vpop.f32.mrb[0].mxu0
    %v1466 = vadd.f32 %v1352, %v1465
    %v1467 = vpop.f32.mrb[0].mxu0
    %1468 = vmatprep.mubr.f32.mxu0 0.0
    %1469 = vmatmul.mubr.f32.gmra.mrb[0].mxu0 %v1325
    %v1470 = vpop.f32.mrb[0].mxu0
    %v1471 = vadd.f32 %v1352, %v1470
    %v1472 = vpop.f32.mrb[0].mxu0
    %1473 = vmatprep.mubr.f32.mxu0 0.0
    %1474 = vmatmul.mubr.f32.gmra.mrb[0].mxu0 %v1326
    %v1475 = vpop.f32.mrb[0].mxu0
    %v1476 = vadd.f32 %v1352, %v1475
    %v1477 = vpop.f32.mrb[0].mxu0
    %1478 = vmatprep.mubr.f32.mxu0 0.0
    %1479 = vmatmul.mubr.f32.gmra.mrb[0].mxu0 %v1327
    %v1480 = vpop.f32.mrb[0].mxu0
    %v1481 = vadd.f32 %v1352, %v1480
    %v1482 = vpop.f32.mrb[0].mxu0
    %1483 = vmatprep.mubr.f32.mxu0 0.0
    %1484 = vmatmul.mubr.f32.gmra.mrb[0].mxu0 %v1328
    %v1485 = vpop.f32.mrb[0].mxu0
    %v1486 = vadd.f32 %v1352, %v1485
    %v1487 = vpop.f32.mrb[0].mxu0
    %1488 = vmatprep.mubr.f32.mxu0 0.0
    %1489 = vmatmul.mubr.f32.gmra.mrb[0].mxu0 %v1329
    %v1490 = vpop.f32.mrb[0].mxu0
    %v1491 = vadd.f32 %v1352, %v1490
    %v1492 = vpop.f32.mrb[0].mxu0
    %1493 = vmatprep.mubr.f32.mxu0 0.0
    %1494 = vmatmul.mubr.f32.gmra.mrb[0].mxu0 %v1330
    %v1495 = vpop.f32.mrb[0].mxu0
    %v1496 = vadd.f32 %v1352, %v1495
    %v1497 = vpop.f32.mrb[0].mxu0
    %1498 = vdwg.mxu0
    %1499 = vst [vmem:[#allocation11] sm:$0xff] %v1421
    %1500 = vst [vmem:[#allocation11 + $0x8] sm:$0xff] %v1426
    %1501 = vst [vmem:[#allocation11 + $0x10] sm:$0xff] %v1431
    %1502 = vst [vmem:[#allocation11 + $0x18] sm:$0xff] %v1436
    %1503 = vst [vmem:[#allocation11 + $0x20] sm:$0xff] %v1441
    %1504 = vst [vmem:[#allocation11 + $0x28] sm:$0xff] %v1446
    %1505 = vst [vmem:[#allocation11 + $0x30] sm:$0xff] %v1451
    %1506 = vst [vmem:[#allocation11 + $0x38] sm:$0xff] %v1456
    %1507 = vst [vmem:[#allocation11 + $0x40] sm:$0xff] %v1461
    %1508 = vst [vmem:[#allocation11 + $0x48] sm:$0xff] %v1466
    %1509 = vst [vmem:[#allocation11 + $0x50] sm:$0xff] %v1471
    %1510 = vst [vmem:[#allocation11 + $0x58] sm:$0xff] %v1476
    %1511 = vst [vmem:[#allocation11 + $0x60] sm:$0xff] %v1481
    %1512 = vst [vmem:[#allocation11 + $0x68] sm:$0xff] %v1486
    %1513 = vst [vmem:[#allocation11 + $0x70] sm:$0xff] %v1491
    %1514 = vst [vmem:[#allocation11 + $0x78] sm:$0xff] %v1496
    // Predicated region
    $region42: #{tpu_custom_call.1} parent=1 // pred_check
      _
    $region43: #{tpu_custom_call.1} parent=1 // pred_check_branch
      %1516 = sbr.rel (0) target = $region45
    $region44: #{tpu_custom_call.1} parent=1 // pred_region
      %s1518 = ssub.s32 2048, 2048
      %1519 = vsyncadd [#allocation5], %s1518
      %s1520 = sshll.u32 [#allocation11], 4
      %s1521 = int_to_ptr.vmem [resolvable:$true] %s1520
      %1526 = dma.vmem_to_hbm [thread:$0]  %s1521, 2048, %s5, [#allocation5], 128, 128, 8
    $region45: #{tpu_custom_call.1} parent=1 // pred_fallthru
      _
    // Predicated region
    $region46: #{tpu_custom_call.1} parent=1 // pred_check
      _
    $region47: #{tpu_custom_call.1} parent=1 // pred_check_branch
      %1528 = sbr.rel (0) target = $region49
    $region48: #{tpu_custom_call.1} parent=1 // pred_region
      %s1530 = ssub.s32 128, 128
      %1531 = vsyncadd [#allocation13], %s1530
      %s1533 = sshll.u32 [#allocation12], 4
      %s1534 = int_to_ptr.vmem [resolvable:$true] %s1533
      %1536 = dma.vmem_to_hbm [thread:$0]  %s1534, 128, %s6, [#allocation13]
    $region49: #{tpu_custom_call.1} parent=1 // pred_fallthru
      _
    // Predicated region
    $region50: #{tpu_custom_call.1} parent=1 // pred_check
      _
    $region51: #{tpu_custom_call.1} parent=1 // pred_check_branch
      %1538 = sbr.rel (0) target = $region53
    $region52: #{tpu_custom_call.1} parent=1 // pred_region
      %1539 = dma.done [#allocation5], 2048
    $region53: #{tpu_custom_call.1} parent=1 // pred_fallthru
      _
    // Predicated region
    $region54: #{tpu_custom_call.1} parent=1 // pred_check
      _
    $region55: #{tpu_custom_call.1} parent=1 // pred_check_branch
      %1541 = sbr.rel (0) target = $region57
    $region56: #{tpu_custom_call.1} parent=1 // pred_region
      %1542 = dma.done [#allocation13], 128
    $region57: #{tpu_custom_call.1} parent=1 // pred_fallthru
      _
    %1543 = vsyncpa [#allocation4], 1
    %1544 = vsyncpa [#allocation7], 1
    %1545 = vsyncpa [#allocation10], 1
    %1546 = vsyncpa [#allocation5], 1
    %1547 = vsyncpa [#allocation13], 1

</llo_original>
